<compile_context>
chip_gen: v7x
topology: tpu7x:2x2x1
jax: 0.10.0
libtpu: 0.0.40
codegen_flags: <defaults>
</compile_context>

<pallas_src>
import functools
import numpy as np
import jax
import jax.numpy as jnp
from jax import lax
from jax.experimental import pallas as pl
from jax.experimental.pallas import tpu as pltpu


def _round_up(x, m):
    return ((x + m - 1) // m) * m


def _largest_divisor_leq(n, cap):
    for c in range(min(n, cap), 0, -1):
        if n % c == 0:
            return c
    return 1


# -----------------------------------------------------------------------------
# Fused kernel: per (batch-block, time-chunk)
#   prologue : xp = x_chunk @ W_ih^T + (b_ih + b_hh)         (one big matmul)
#   loop     : h  = tanh(xp_t + h @ W_hh^T)                  (serial, tb steps)
#   epilogue : pred_chunk = h_chunk @ W_op_pad + b_op        (lane-dense K=Hp)
# -----------------------------------------------------------------------------
def _microcircuit_chunk_kernel(tb, unroll,
                               x_ref, h0_ref, wih_ref, whh_ref, b_ref,
                               wop_ref, bop_ref,
                               hseq_ref, pred_ref,
                               h_state, xp_s):
    bb = x_ref.shape[1]
    f_in = x_ref.shape[2]
    hp = whh_ref.shape[0]

    # New batch block starts -> load its initial hidden state.
    @pl.when(pl.program_id(1) == 0)
    def _():
        h_state[...] = h0_ref[...]

    # --- prologue: input projection for all tb timesteps (off serial path) ---
    xc = x_ref[...].reshape(tb * bb, f_in).astype(wih_ref.dtype)
    xp = jnp.dot(xc, wih_ref[...], preferred_element_type=jnp.float32) + b_ref[...]
    xp_s[...] = xp.reshape(tb, bb, hp)

    # --- serial recurrence: invariant weight hoisted out of the loop ---------
    whh = whh_ref[...]

    def step(i, h):
        h_new = jnp.tanh(
            xp_s[i] + jnp.dot(h.astype(whh.dtype), whh,
                              preferred_element_type=jnp.float32))
        hseq_ref[i] = h_new
        return h_new

    h_state[...] = lax.fori_loop(0, tb, step, h_state[...], unroll=unroll)

    # --- epilogue: output projection (zero-padded W_op, K = Hp lane-dense) ---
    hc = hseq_ref[...].reshape(tb * bb, hp)
    pred = jnp.dot(hc, wop_ref[...], preferred_element_type=jnp.float32) + bop_ref[...]
    pred_ref[...] = pred.reshape(tb, bb, f_in)


def _fused_forward(x_tm, h0, wih_t, whh_t, b, wop_pad, bop,
                   *, time_chunk=64, unroll=8):
    """x_tm: (T, Bp, F) time-major, batch padded to a multiple of 8.
    Returns hseq (T, Bp, Hp) and pred (T, Bp, F)."""
    T, Bp, F = x_tm.shape
    Hp = whh_t.shape[0]

    tb = _largest_divisor_leq(T, time_chunk)
    nt = T // tb
    # v7x: 2 TensorCores -> split independent batches onto a "parallel" axis.
    nb = 2 if (Bp % 16 == 0) else 1
    bb = Bp // nb

    # VMEM budget derived from the actual tile sizes (double-buffered blocks
    # + scratch + headroom), clamped for v7x's smaller physical VMEM.
    wbytes = jnp.dtype(wih_t.dtype).itemsize
    blk = 4 * tb * bb * (2 * F + Hp) + 4 * bb * Hp          # x, pred, hseq, h0
    blk += wbytes * (F * Hp + Hp * Hp) + 4 * (Hp + Hp * F + F)
    scratch = 4 * (bb * Hp + tb * bb * Hp)
    vmem_limit = int(min(max(2 * blk + scratch + (8 << 20), 16 << 20), 48 << 20))

    kernel = functools.partial(_microcircuit_chunk_kernel, tb, min(unroll, tb))
    hseq, pred = pl.pallas_call(
        kernel,
        out_shape=(jax.ShapeDtypeStruct((T, Bp, Hp), jnp.float32),
                   jax.ShapeDtypeStruct((T, Bp, F), jnp.float32)),
        grid_spec=pltpu.PrefetchScalarGridSpec(
            num_scalar_prefetch=0,
            grid=(nb, nt),
            in_specs=[
                pl.BlockSpec((tb, bb, F), lambda ib, ic: (ic, ib, 0)),   # x chunk
                pl.BlockSpec((bb, Hp), lambda ib, ic: (ib, 0)),          # h0
                pl.BlockSpec((F, Hp), lambda ib, ic: (0, 0)),            # W_ih^T (bf16)
                pl.BlockSpec((Hp, Hp), lambda ib, ic: (0, 0)),           # W_hh^T (bf16)
                pl.BlockSpec((1, Hp), lambda ib, ic: (0, 0)),            # b_ih + b_hh
                pl.BlockSpec((Hp, F), lambda ib, ic: (0, 0)),            # W_op padded
                pl.BlockSpec((1, F), lambda ib, ic: (0, 0)),             # b_op
            ],
            out_specs=[
                pl.BlockSpec((tb, bb, Hp), lambda ib, ic: (ic, ib, 0)),  # hseq chunk
                pl.BlockSpec((tb, bb, F), lambda ib, ic: (ic, ib, 0)),   # pred chunk
            ],
            scratch_shapes=[
                pltpu.VMEM((bb, Hp), jnp.float32),       # carried hidden state
                pltpu.VMEM((tb, bb, Hp), jnp.float32),   # per-chunk input drive
            ]),
        compiler_params=pltpu.CompilerParams(
            dimension_semantics=("parallel", "arbitrary"),
            vmem_limit_bytes=vmem_limit),
    )(x_tm, h0, wih_t, whh_t, b.reshape(1, Hp), wop_pad, bop.reshape(1, F))
    return hseq, pred


# -----------------------------------------------------------------------------
# Parameter / mask construction (deterministic, synthetic)
# -----------------------------------------------------------------------------
def init_params(key, n_features, hidden_dim, pop, p_edge, batch,
                weight_dtype=jnp.bfloat16):
    hd = hidden_dim
    sizes = [pop[0] * hd, pop[1] * hd, pop[2] * hd]          # L4, L23, L56
    all_sizes = sizes + sizes                                 # + H4, H23, H56
    offs = np.cumsum([0] + all_sizes)                         # 7 offsets
    H = int(offs[-1])
    Hp = _round_up(H, 128)                                    # lane-dense hidden dim

    keys = jax.random.split(key, 8)
    k = 1.0 / np.sqrt(H)
    w_ih = jax.random.uniform(keys[0], (H, n_features), jnp.float32, -k, k)
    w_hh = jax.random.uniform(keys[1], (H, H), jnp.float32, -k, k)
    b_ih = jax.random.uniform(keys[2], (H,), jnp.float32, -k, k)
    b_hh = jax.random.uniform(keys[3], (H,), jnp.float32, -k, k)

    # BBin: only L4 rows of weight_ih receive the input.
    m_ih = np.zeros((H, n_features), np.float32)
    m_ih[:sizes[0], :] = 1.0

    # Block indices: 0=L4, 1=L23, 2=L56, 3=H4, 4=H23, 5=H56.
    # Blocks masked with p=0 (hard-zeroed) in the PyTorch forward:
    zero_blocks = [(0, 2), (1, 0), (2, 1), (3, 5), (4, 3), (5, 4),
                   (1, 4), (1, 5), (0, 3), (0, 4), (0, 5),
                   (2, 3), (2, 4), (2, 5),
                   (3, 0), (3, 1), (3, 2),
                   (4, 0), (4, 1), (4, 2), (5, 0)]
    # Blocks masked with Bernoulli(p_edge): L423, L2356, L564, H423, H2356,
    # H564, FBa, FBb.  (BBFF hits [L4,H23] which was already zeroed.)
    p_blocks = [(0, 1), (1, 2), (2, 0), (3, 4), (4, 5), (5, 3), (5, 1), (5, 2)]

    m_hh = np.ones((H, H), np.float32)
    for (d, s) in zero_blocks:
        m_hh[offs[d]:offs[d + 1], offs[s]:offs[s + 1]] = 0.0
    m_hh = jnp.asarray(m_hh)
    p_keys = jax.random.split(keys[4], len(p_blocks))
    for pk, (d, s) in zip(p_keys, p_blocks):
        blk = jax.random.bernoulli(
            pk, p_edge, (int(offs[d + 1] - offs[d]), int(offs[s + 1] - offs[s])))
        m_hh = m_hh.at[offs[d]:offs[d + 1], offs[s]:offs[s + 1]].set(
            blk.astype(jnp.float32))

    wih_masked = w_ih * jnp.asarray(m_ih)
    whh_masked = w_hh * m_hh

    # Zero-pad the hidden dim to Hp; padded state entries stay exactly 0
    # through the tanh recurrence (zero weights/bias/h0), so this is exact.
    wih_t = jnp.zeros((n_features, Hp), jnp.float32).at[:, :H].set(
        wih_masked.T).astype(weight_dtype)
    whh_t = jnp.zeros((Hp, Hp), jnp.float32).at[:H, :H].set(
        whh_masked.T).astype(weight_dtype)
    b = jnp.zeros((Hp,), jnp.float32).at[:H].set(b_ih + b_hh)

    # opLayer: Linear(pop[1]*hd -> n_features), applied to the H23 slice.
    # Padded to (Hp, F): rows outside [startH23, endH23) are zero, so
    # h_full @ wop_pad == h[:, H23] @ W_op^T exactly (lane-dense contraction).
    ko = 1.0 / np.sqrt(sizes[1])
    w_op = jax.random.uniform(keys[5], (n_features, sizes[1]), jnp.float32, -ko, ko)
    b_op = jax.random.uniform(keys[6], (n_features,), jnp.float32, -ko, ko)
    s23, e23 = int(offs[4]), int(offs[5])
    wop_pad = jnp.zeros((Hp, n_features), jnp.float32).at[s23:e23, :].set(w_op.T)

    # h0: torch.rand in the original forward; deterministic JAX uniform here.
    h0 = jax.random.uniform(keys[7], (batch, H), jnp.float32)
    h0_pad = jnp.zeros((batch, Hp), jnp.float32).at[:, :H].set(h0)

    params = dict(
        h0=h0_pad,                               # (B, Hp)
        wih_t=wih_t,                             # (F, Hp) masked + padded, bf16
        whh_t=whh_t,                             # (Hp, Hp) masked + padded, bf16
        b=b,                                     # (Hp,) f32
        wop_pad=wop_pad,                         # (Hp, F) f32, zero outside H23
        bop=b_op,                                # (F,) f32
    )
    return params, offs


# -----------------------------------------------------------------------------
# Forward wrapper (matches the PyTorch return structure)
# -----------------------------------------------------------------------------
def microcircuit_forward(x, params, pop, hidden_dim, *, time_chunk=64):
    """x: (B, T, F) batch-first, as in PyTorch."""
    B, T, F = x.shape
    hd = hidden_dim
    sizes = [pop[0] * hd, pop[1] * hd, pop[2] * hd]
    offs = np.cumsum([0] + sizes + sizes)
    H = int(offs[-1])
    Bp = _round_up(B, 8)                                      # sublane-pad batch

    x_tm = jnp.swapaxes(x, 0, 1)                              # (T, B, F)
    if Bp != B:
        x_tm = jnp.pad(x_tm, ((0, 0), (0, Bp - B), (0, 0)))
        h0 = jnp.pad(params['h0'], ((0, Bp - B), (0, 0)))
    else:
        h0 = params['h0']

    hseq, pred_tm = _fused_forward(
        x_tm, h0, params['wih_t'], params['whh_t'], params['b'],
        params['wop_pad'], params['bop'], time_chunk=time_chunk)

    h_bf = jnp.swapaxes(hseq[:, :B, :H], 0, 1)                # (B, T, H)
    pred = jnp.swapaxes(pred_tm[:, :B, :], 0, 1)              # (B, T, F)

    opL4 = h_bf[:, :, offs[0]:offs[1]]
    opL23 = h_bf[:, :, offs[1]:offs[2]]
    opL56 = h_bf[:, :, offs[2]:offs[3]]
    opH4 = h_bf[:, :, offs[3]:offs[4]]
    opH23 = h_bf[:, :, offs[4]:offs[5]]
    opH56 = h_bf[:, :, offs[5]:offs[6]]

    # Never written in the PyTorch forward -> remain zero.  (Kept only to match
    # the original return structure; drop if the caller does not need them.)
    diffL23 = jnp.zeros((B, T, sizes[1]), jnp.float32)
    diffL56 = jnp.zeros((B, T, sizes[2]), jnp.float32)
    opProjFF = jnp.zeros((B, T, sizes[0]), jnp.float32)
    opProjFBa = jnp.zeros((B, T, sizes[1]), jnp.float32)
    opProjFBb = jnp.zeros((B, T, sizes[2]), jnp.float32)

    return (pred,
            (opL23, opL4, opL56, opH23, opH4, opH56),
            (diffL23, diffL56),
            (opProjFF, opProjFBa, opProjFBb))


# -----------------------------------------------------------------------------
# Pure-JAX reference (same bf16-rounded weights, f32 accumulation)
# -----------------------------------------------------------------------------
def ref_forward(x, params, offs):
    wih, whh = params['wih_t'], params['whh_t']
    b = params['b']
    H = int(offs[-1])

    def step(h, xt):
        pre = (jnp.dot(xt.astype(wih.dtype), wih, preferred_element_type=jnp.float32)
               + jnp.dot(h.astype(whh.dtype), whh, preferred_element_type=jnp.float32)
               + b)
        h_new = jnp.tanh(pre)
        return h_new, h_new

    _, hs = lax.scan(step, params['h0'], jnp.swapaxes(x, 0, 1))   # (T, B, Hp)
    pred = jnp.dot(hs, params['wop_pad'],
                   preferred_element_type=jnp.float32) + params['bop']
    return jnp.swapaxes(pred, 0, 1), jnp.swapaxes(hs[:, :, :H], 0, 1)


if __name__ == "__main__":
    B, T, F_IN = 4, 8, 64
    hidden_dim = 8
    pop = [2, 5, 4]
    p_edge = 0.3

    key = jax.random.PRNGKey(0)
    kx, kp = jax.random.split(key)
    x = jax.random.normal(kx, (B, T, F_IN), jnp.float32)
    params, offs = init_params(kp, F_IN, hidden_dim, pop, p_edge, B)

    out = microcircuit_forward(x, params, pop, hidden_dim)
    out = jax.block_until_ready(out)
    pred, ops, diffs, projs = out

    pred_ref, h_ref = ref_forward(x, params, offs)
    np.testing.assert_allclose(np.asarray(pred), np.asarray(pred_ref),
                               rtol=2e-3, atol=2e-3)
    np.testing.assert_allclose(np.asarray(ops[0]),                      # opL23
                               np.asarray(h_ref[:, :, offs[1]:offs[2]]),
                               rtol=2e-3, atol=2e-3)
    np.testing.assert_allclose(np.asarray(ops[3]),                      # opH23
                               np.asarray(h_ref[:, :, offs[4]:offs[5]]),
                               rtol=2e-3, atol=2e-3)
    print("KERNEL_OK")
</pallas_src>

<mosaic_0001>
module attributes {stable_mosaic.version = 11 : i64} {
  func.func @_microcircuit_chunk_kernel(%arg0: i32, %arg1: i32, %arg2: memref<8x8x64xf32, #tpu.memory_space<vmem>>, %arg3: memref<8x256xf32, #tpu.memory_space<vmem>>, %arg4: memref<64x256xbf16, #tpu.memory_space<vmem>>, %arg5: memref<256x256xbf16, #tpu.memory_space<vmem>>, %arg6: memref<1x256xf32, #tpu.memory_space<vmem>>, %arg7: memref<256x64xf32, #tpu.memory_space<vmem>>, %arg8: memref<1x64xf32, #tpu.memory_space<vmem>>, %arg9: memref<8x8x256xf32, #tpu.memory_space<vmem>>, %arg10: memref<8x8x64xf32, #tpu.memory_space<vmem>>, %arg11: memref<8x256xf32, #tpu.memory_space<vmem>>, %arg12: memref<8x8x256xf32, #tpu.memory_space<vmem>>) attributes {dimension_semantics = [#tpu.dimension_semantics<parallel>, #tpu.dimension_semantics<arbitrary>], iteration_bounds = array<i64: 1, 1>, scalar_prefetch = 0 : i64, scratch_operands = 2 : i64, tpu.core_type = #tpu.core_type<tc>, window_params = [{transform_indices = @transform_0, window_bounds = array<i64: 8, 8, 64>}, {transform_indices = @transform_1, window_bounds = array<i64: 8, 256>}, {pipeline_mode = #tpu.pipeline_mode<synchronous>, transform_indices = @transform_2, window_bounds = array<i64: 64, 256>}, {pipeline_mode = #tpu.pipeline_mode<synchronous>, transform_indices = @transform_3, window_bounds = array<i64: 256, 256>}, {pipeline_mode = #tpu.pipeline_mode<synchronous>, transform_indices = @transform_4, window_bounds = array<i64: 1, 256>}, {pipeline_mode = #tpu.pipeline_mode<synchronous>, transform_indices = @transform_5, window_bounds = array<i64: 256, 64>}, {pipeline_mode = #tpu.pipeline_mode<synchronous>, transform_indices = @transform_6, window_bounds = array<i64: 1, 64>}, {transform_indices = @transform_7, window_bounds = array<i64: 8, 8, 256>}, {transform_indices = @transform_8, window_bounds = array<i64: 8, 8, 64>}]} {
    %c0_i32 = arith.constant 0 : i32
    %0 = arith.cmpi eq, %arg1, %c0_i32 : i32
    %1 = arith.extui %0 : i1 to i32
    %c0_i32_0 = arith.constant 0 : i32
    %2 = arith.cmpi ne, %1, %c0_i32_0 : i32
    scf.if %2 {
      %c0_68 = arith.constant 0 : index
      %c0_69 = arith.constant 0 : index
      %113 = vector.load %arg3[%c0_68, %c0_69] : memref<8x256xf32, #tpu.memory_space<vmem>>, vector<8x256xf32>
      %c0_70 = arith.constant 0 : index
      %c0_71 = arith.constant 0 : index
      %114 = vector.load %arg11[%c0_70, %c0_71] : memref<8x256xf32, #tpu.memory_space<vmem>>, vector<8x256xf32>
      tpu.vector_store %arg11[%c0_70, %c0_71], %113 {strides = array<i32>} : memref<8x256xf32, #tpu.memory_space<vmem>>, vector<8x256xf32>,
    } else {
    }
    %c0 = arith.constant 0 : index
    %c0_1 = arith.constant 0 : index
    %c0_2 = arith.constant 0 : index
    %3 = vector.load %arg2[%c0, %c0_1, %c0_2] : memref<8x8x64xf32, #tpu.memory_space<vmem>>, vector<8x8x64xf32>
    %4 = vector.shape_cast %3 : vector<8x8x64xf32> to vector<64x64xf32>
    %5 = arith.truncf %4 : vector<64x64xf32> to vector<64x64xbf16>
    %c0_3 = arith.constant 0 : index
    %c0_4 = arith.constant 0 : index
    %6 = vector.load %arg4[%c0_3, %c0_4] : memref<64x256xbf16, #tpu.memory_space<vmem>>, vector<64x256xbf16>
    %cst = arith.constant dense<0.000000e+00> : vector<64x256xf32>
    %7 = tpu.matmul %5, %6, %cst {dimension_numbers = #tpu.dot_dimension_numbers<[1], [0], [0], [1], [0, 0, 1, 1], [], []>} : vector<64x64xbf16>, vector<64x256xbf16>, vector<64x256xf32> -> vector<64x256xf32>
    %c0_5 = arith.constant 0 : index
    %c0_6 = arith.constant 0 : index
    %8 = vector.load %arg6[%c0_5, %c0_6] : memref<1x256xf32, #tpu.memory_space<vmem>>, vector<1x256xf32>
    %9 = vector.broadcast %8 : vector<1x256xf32> to vector<64x256xf32>
    %10 = arith.addf %7, %9 : vector<64x256xf32>
    %11 = vector.shape_cast %10 : vector<64x256xf32> to vector<8x8x256xf32>
    %c0_7 = arith.constant 0 : index
    %c0_8 = arith.constant 0 : index
    %c0_9 = arith.constant 0 : index
    %12 = vector.load %arg12[%c0_7, %c0_8, %c0_9] : memref<8x8x256xf32, #tpu.memory_space<vmem>>, vector<8x8x256xf32>
    tpu.vector_store %arg12[%c0_7, %c0_8, %c0_9], %11 {strides = array<i32>} : memref<8x8x256xf32, #tpu.memory_space<vmem>>, vector<8x8x256xf32>,
    %c0_10 = arith.constant 0 : index
    %c0_11 = arith.constant 0 : index
    %13 = vector.load %arg5[%c0_10, %c0_11] : memref<256x256xbf16, #tpu.memory_space<vmem>>, vector<256x256xbf16>
    %c0_12 = arith.constant 0 : index
    %c0_13 = arith.constant 0 : index
    %14 = vector.load %arg11[%c0_12, %c0_13] : memref<8x256xf32, #tpu.memory_space<vmem>>, vector<8x256xf32>
    %c0_i32_14 = arith.constant 0 : i32
    %15 = arith.index_cast %c0_i32_14 : i32 to index
    %c0_15 = arith.constant 0 : index
    %c0_16 = arith.constant 0 : index
    %16 = vector.load %arg12[%15, %c0_15, %c0_16] : memref<8x8x256xf32, #tpu.memory_space<vmem>>, vector<1x8x256xf32>
    %17 = vector.shape_cast %16 : vector<1x8x256xf32> to vector<8x256xf32>
    %18 = arith.truncf %14 : vector<8x256xf32> to vector<8x256xbf16>
    %cst_17 = arith.constant dense<0.000000e+00> : vector<8x256xf32>
    %19 = tpu.matmul %18, %13, %cst_17 {dimension_numbers = #tpu.dot_dimension_numbers<[1], [0], [0], [1], [0, 0, 1, 1], [], []>} : vector<8x256xbf16>, vector<256x256xbf16>, vector<8x256xf32> -> vector<8x256xf32>
    %20 = arith.addf %17, %19 : vector<8x256xf32>
    %21 = math.tanh %20 : vector<8x256xf32>
    %22 = arith.index_cast %c0_i32_14 : i32 to index
    %c0_18 = arith.constant 0 : index
    %c0_19 = arith.constant 0 : index
    %23 = vector.load %arg9[%22, %c0_18, %c0_19] : memref<8x8x256xf32, #tpu.memory_space<vmem>>, vector<1x8x256xf32>
    %24 = vector.shape_cast %23 : vector<1x8x256xf32> to vector<8x256xf32>
    %25 = vector.shape_cast %21 : vector<8x256xf32> to vector<1x8x256xf32>
    tpu.vector_store %arg9[%22, %c0_18, %c0_19], %25 {strides = array<i32>} : memref<8x8x256xf32, #tpu.memory_space<vmem>>, vector<1x8x256xf32>,
    %c1_i32 = arith.constant 1 : i32
    %26 = arith.index_cast %c1_i32 : i32 to index
    %c0_20 = arith.constant 0 : index
    %c0_21 = arith.constant 0 : index
    %27 = vector.load %arg12[%26, %c0_20, %c0_21] : memref<8x8x256xf32, #tpu.memory_space<vmem>>, vector<1x8x256xf32>
    %28 = vector.shape_cast %27 : vector<1x8x256xf32> to vector<8x256xf32>
    %29 = arith.truncf %21 : vector<8x256xf32> to vector<8x256xbf16>
    %cst_22 = arith.constant dense<0.000000e+00> : vector<8x256xf32>
    %30 = tpu.matmul %29, %13, %cst_22 {dimension_numbers = #tpu.dot_dimension_numbers<[1], [0], [0], [1], [0, 0, 1, 1], [], []>} : vector<8x256xbf16>, vector<256x256xbf16>, vector<8x256xf32> -> vector<8x256xf32>
    %31 = arith.addf %28, %30 : vector<8x256xf32>
    %32 = math.tanh %31 : vector<8x256xf32>
    %33 = arith.index_cast %c1_i32 : i32 to index
    %c0_23 = arith.constant 0 : index
    %c0_24 = arith.constant 0 : index
    %34 = vector.load %arg9[%33, %c0_23, %c0_24] : memref<8x8x256xf32, #tpu.memory_space<vmem>>, vector<1x8x256xf32>
    %35 = vector.shape_cast %34 : vector<1x8x256xf32> to vector<8x256xf32>
    %36 = vector.shape_cast %32 : vector<8x256xf32> to vector<1x8x256xf32>
    tpu.vector_store %arg9[%33, %c0_23, %c0_24], %36 {strides = array<i32>} : memref<8x8x256xf32, #tpu.memory_space<vmem>>, vector<1x8x256xf32>,
    %c2_i32 = arith.constant 2 : i32
    %37 = arith.index_cast %c2_i32 : i32 to index
    %c0_25 = arith.constant 0 : index
    %c0_26 = arith.constant 0 : index
    %38 = vector.load %arg12[%37, %c0_25, %c0_26] : memref<8x8x256xf32, #tpu.memory_space<vmem>>, vector<1x8x256xf32>
    %39 = vector.shape_cast %38 : vector<1x8x256xf32> to vector<8x256xf32>
    %40 = arith.truncf %32 : vector<8x256xf32> to vector<8x256xbf16>
    %cst_27 = arith.constant dense<0.000000e+00> : vector<8x256xf32>
    %41 = tpu.matmul %40, %13, %cst_27 {dimension_numbers = #tpu.dot_dimension_numbers<[1], [0], [0], [1], [0, 0, 1, 1], [], []>} : vector<8x256xbf16>, vector<256x256xbf16>, vector<8x256xf32> -> vector<8x256xf32>
    %42 = arith.addf %39, %41 : vector<8x256xf32>
    %43 = math.tanh %42 : vector<8x256xf32>
    %44 = arith.index_cast %c2_i32 : i32 to index
    %c0_28 = arith.constant 0 : index
    %c0_29 = arith.constant 0 : index
    %45 = vector.load %arg9[%44, %c0_28, %c0_29] : memref<8x8x256xf32, #tpu.memory_space<vmem>>, vector<1x8x256xf32>
    %46 = vector.shape_cast %45 : vector<1x8x256xf32> to vector<8x256xf32>
    %47 = vector.shape_cast %43 : vector<8x256xf32> to vector<1x8x256xf32>
    tpu.vector_store %arg9[%44, %c0_28, %c0_29], %47 {strides = array<i32>} : memref<8x8x256xf32, #tpu.memory_space<vmem>>, vector<1x8x256xf32>,
    %c3_i32 = arith.constant 3 : i32
    %48 = arith.index_cast %c3_i32 : i32 to index
    %c0_30 = arith.constant 0 : index
    %c0_31 = arith.constant 0 : index
    %49 = vector.load %arg12[%48, %c0_30, %c0_31] : memref<8x8x256xf32, #tpu.memory_space<vmem>>, vector<1x8x256xf32>
    %50 = vector.shape_cast %49 : vector<1x8x256xf32> to vector<8x256xf32>
    %51 = arith.truncf %43 : vector<8x256xf32> to vector<8x256xbf16>
    %cst_32 = arith.constant dense<0.000000e+00> : vector<8x256xf32>
    %52 = tpu.matmul %51, %13, %cst_32 {dimension_numbers = #tpu.dot_dimension_numbers<[1], [0], [0], [1], [0, 0, 1, 1], [], []>} : vector<8x256xbf16>, vector<256x256xbf16>, vector<8x256xf32> -> vector<8x256xf32>
    %53 = arith.addf %50, %52 : vector<8x256xf32>
    %54 = math.tanh %53 : vector<8x256xf32>
    %55 = arith.index_cast %c3_i32 : i32 to index
    %c0_33 = arith.constant 0 : index
    %c0_34 = arith.constant 0 : index
    %56 = vector.load %arg9[%55, %c0_33, %c0_34] : memref<8x8x256xf32, #tpu.memory_space<vmem>>, vector<1x8x256xf32>
    %57 = vector.shape_cast %56 : vector<1x8x256xf32> to vector<8x256xf32>
    %58 = vector.shape_cast %54 : vector<8x256xf32> to vector<1x8x256xf32>
    tpu.vector_store %arg9[%55, %c0_33, %c0_34], %58 {strides = array<i32>} : memref<8x8x256xf32, #tpu.memory_space<vmem>>, vector<1x8x256xf32>,
    %c4_i32 = arith.constant 4 : i32
    %59 = arith.index_cast %c4_i32 : i32 to index
    %c0_35 = arith.constant 0 : index
    %c0_36 = arith.constant 0 : index
    %60 = vector.load %arg12[%59, %c0_35, %c0_36] : memref<8x8x256xf32, #tpu.memory_space<vmem>>, vector<1x8x256xf32>
    %61 = vector.shape_cast %60 : vector<1x8x256xf32> to vector<8x256xf32>
    %62 = arith.truncf %54 : vector<8x256xf32> to vector<8x256xbf16>
    %cst_37 = arith.constant dense<0.000000e+00> : vector<8x256xf32>
    %63 = tpu.matmul %62, %13, %cst_37 {dimension_numbers = #tpu.dot_dimension_numbers<[1], [0], [0], [1], [0, 0, 1, 1], [], []>} : vector<8x256xbf16>, vector<256x256xbf16>, vector<8x256xf32> -> vector<8x256xf32>
    %64 = arith.addf %61, %63 : vector<8x256xf32>
    %65 = math.tanh %64 : vector<8x256xf32>
    %66 = arith.index_cast %c4_i32 : i32 to index
    %c0_38 = arith.constant 0 : index
    %c0_39 = arith.constant 0 : index
    %67 = vector.load %arg9[%66, %c0_38, %c0_39] : memref<8x8x256xf32, #tpu.memory_space<vmem>>, vector<1x8x256xf32>
    %68 = vector.shape_cast %67 : vector<1x8x256xf32> to vector<8x256xf32>
    %69 = vector.shape_cast %65 : vector<8x256xf32> to vector<1x8x256xf32>
    tpu.vector_store %arg9[%66, %c0_38, %c0_39], %69 {strides = array<i32>} : memref<8x8x256xf32, #tpu.memory_space<vmem>>, vector<1x8x256xf32>,
    %c5_i32 = arith.constant 5 : i32
    %70 = arith.index_cast %c5_i32 : i32 to index
    %c0_40 = arith.constant 0 : index
    %c0_41 = arith.constant 0 : index
    %71 = vector.load %arg12[%70, %c0_40, %c0_41] : memref<8x8x256xf32, #tpu.memory_space<vmem>>, vector<1x8x256xf32>
    %72 = vector.shape_cast %71 : vector<1x8x256xf32> to vector<8x256xf32>
    %73 = arith.truncf %65 : vector<8x256xf32> to vector<8x256xbf16>
    %cst_42 = arith.constant dense<0.000000e+00> : vector<8x256xf32>
    %74 = tpu.matmul %73, %13, %cst_42 {dimension_numbers = #tpu.dot_dimension_numbers<[1], [0], [0], [1], [0, 0, 1, 1], [], []>} : vector<8x256xbf16>, vector<256x256xbf16>, vector<8x256xf32> -> vector<8x256xf32>
    %75 = arith.addf %72, %74 : vector<8x256xf32>
    %76 = math.tanh %75 : vector<8x256xf32>
    %77 = arith.index_cast %c5_i32 : i32 to index
    %c0_43 = arith.constant 0 : index
    %c0_44 = arith.constant 0 : index
    %78 = vector.load %arg9[%77, %c0_43, %c0_44] : memref<8x8x256xf32, #tpu.memory_space<vmem>>, vector<1x8x256xf32>
    %79 = vector.shape_cast %78 : vector<1x8x256xf32> to vector<8x256xf32>
    %80 = vector.shape_cast %76 : vector<8x256xf32> to vector<1x8x256xf32>
    tpu.vector_store %arg9[%77, %c0_43, %c0_44], %80 {strides = array<i32>} : memref<8x8x256xf32, #tpu.memory_space<vmem>>, vector<1x8x256xf32>,
    %c6_i32 = arith.constant 6 : i32
    %81 = arith.index_cast %c6_i32 : i32 to index
    %c0_45 = arith.constant 0 : index
    %c0_46 = arith.constant 0 : index
    %82 = vector.load %arg12[%81, %c0_45, %c0_46] : memref<8x8x256xf32, #tpu.memory_space<vmem>>, vector<1x8x256xf32>
    %83 = vector.shape_cast %82 : vector<1x8x256xf32> to vector<8x256xf32>
    %84 = arith.truncf %76 : vector<8x256xf32> to vector<8x256xbf16>
    %cst_47 = arith.constant dense<0.000000e+00> : vector<8x256xf32>
    %85 = tpu.matmul %84, %13, %cst_47 {dimension_numbers = #tpu.dot_dimension_numbers<[1], [0], [0], [1], [0, 0, 1, 1], [], []>} : vector<8x256xbf16>, vector<256x256xbf16>, vector<8x256xf32> -> vector<8x256xf32>
    %86 = arith.addf %83, %85 : vector<8x256xf32>
    %87 = math.tanh %86 : vector<8x256xf32>
    %88 = arith.index_cast %c6_i32 : i32 to index
    %c0_48 = arith.constant 0 : index
    %c0_49 = arith.constant 0 : index
    %89 = vector.load %arg9[%88, %c0_48, %c0_49] : memref<8x8x256xf32, #tpu.memory_space<vmem>>, vector<1x8x256xf32>
    %90 = vector.shape_cast %89 : vector<1x8x256xf32> to vector<8x256xf32>
    %91 = vector.shape_cast %87 : vector<8x256xf32> to vector<1x8x256xf32>
    tpu.vector_store %arg9[%88, %c0_48, %c0_49], %91 {strides = array<i32>} : memref<8x8x256xf32, #tpu.memory_space<vmem>>, vector<1x8x256xf32>,
    %c7_i32 = arith.constant 7 : i32
    %92 = arith.index_cast %c7_i32 : i32 to index
    %c0_50 = arith.constant 0 : index
    %c0_51 = arith.constant 0 : index
    %93 = vector.load %arg12[%92, %c0_50, %c0_51] : memref<8x8x256xf32, #tpu.memory_space<vmem>>, vector<1x8x256xf32>
    %94 = vector.shape_cast %93 : vector<1x8x256xf32> to vector<8x256xf32>
    %95 = arith.truncf %87 : vector<8x256xf32> to vector<8x256xbf16>
    %cst_52 = arith.constant dense<0.000000e+00> : vector<8x256xf32>
    %96 = tpu.matmul %95, %13, %cst_52 {dimension_numbers = #tpu.dot_dimension_numbers<[1], [0], [0], [1], [0, 0, 1, 1], [], []>} : vector<8x256xbf16>, vector<256x256xbf16>, vector<8x256xf32> -> vector<8x256xf32>
    %97 = arith.addf %94, %96 : vector<8x256xf32>
    %98 = math.tanh %97 : vector<8x256xf32>
    %99 = arith.index_cast %c7_i32 : i32 to index
    %c0_53 = arith.constant 0 : index
    %c0_54 = arith.constant 0 : index
    %100 = vector.load %arg9[%99, %c0_53, %c0_54] : memref<8x8x256xf32, #tpu.memory_space<vmem>>, vector<1x8x256xf32>
    %101 = vector.shape_cast %100 : vector<1x8x256xf32> to vector<8x256xf32>
    %102 = vector.shape_cast %98 : vector<8x256xf32> to vector<1x8x256xf32>
    tpu.vector_store %arg9[%99, %c0_53, %c0_54], %102 {strides = array<i32>} : memref<8x8x256xf32, #tpu.memory_space<vmem>>, vector<1x8x256xf32>,
    %c8_i32 = arith.constant 8 : i32
    %c0_55 = arith.constant 0 : index
    %c0_56 = arith.constant 0 : index
    %103 = vector.load %arg11[%c0_55, %c0_56] : memref<8x256xf32, #tpu.memory_space<vmem>>, vector<8x256xf32>
    tpu.vector_store %arg11[%c0_55, %c0_56], %98 {strides = array<i32>} : memref<8x256xf32, #tpu.memory_space<vmem>>, vector<8x256xf32>,
    %c0_57 = arith.constant 0 : index
    %c0_58 = arith.constant 0 : index
    %c0_59 = arith.constant 0 : index
    %104 = vector.load %arg9[%c0_57, %c0_58, %c0_59] : memref<8x8x256xf32, #tpu.memory_space<vmem>>, vector<8x8x256xf32>
    %105 = vector.shape_cast %104 : vector<8x8x256xf32> to vector<64x256xf32>
    %c0_60 = arith.constant 0 : index
    %c0_61 = arith.constant 0 : index
    %106 = vector.load %arg7[%c0_60, %c0_61] : memref<256x64xf32, #tpu.memory_space<vmem>>, vector<256x64xf32>
    %cst_62 = arith.constant dense<0.000000e+00> : vector<64x64xf32>
    %107 = tpu.matmul %105, %106, %cst_62 {dimension_numbers = #tpu.dot_dimension_numbers<[1], [0], [0], [1], [0, 0, 1, 1], [], []>} : vector<64x256xf32>, vector<256x64xf32>, vector<64x64xf32> -> vector<64x64xf32>
    %c0_63 = arith.constant 0 : index
    %c0_64 = arith.constant 0 : index
    %108 = vector.load %arg8[%c0_63, %c0_64] : memref<1x64xf32, #tpu.memory_space<vmem>>, vector<1x64xf32>
    %109 = vector.broadcast %108 : vector<1x64xf32> to vector<64x64xf32>
    %110 = arith.addf %107, %109 : vector<64x64xf32>
    %111 = vector.shape_cast %110 : vector<64x64xf32> to vector<8x8x64xf32>
    %c0_65 = arith.constant 0 : index
    %c0_66 = arith.constant 0 : index
    %c0_67 = arith.constant 0 : index
    %112 = vector.load %arg10[%c0_65, %c0_66, %c0_67] : memref<8x8x64xf32, #tpu.memory_space<vmem>>, vector<8x8x64xf32>
    tpu.vector_store %arg10[%c0_65, %c0_66, %c0_67], %111 {strides = array<i32>} : memref<8x8x64xf32, #tpu.memory_space<vmem>>, vector<8x8x64xf32>,
    return
  }
  func.func @transform_0(%arg0: i32, %arg1: i32) -> (i32, i32, i32) {
    %c0_i32 = arith.constant 0 : i32
    %c0_i32_0 = arith.constant 0 : i32
    return %arg1, %arg0, %c0_i32 : i32, i32, i32
  }
  func.func @transform_1(%arg0: i32, %arg1: i32) -> (i32, i32) {
    %c0_i32 = arith.constant 0 : i32
    %c0_i32_0 = arith.constant 0 : i32
    return %arg0, %c0_i32 : i32, i32
  }
  func.func @transform_2(%arg0: i32, %arg1: i32) -> (i32, i32) {
    %c0_i32 = arith.constant 0 : i32
    %c0_i32_0 = arith.constant 0 : i32
    %c0_i32_1 = arith.constant 0 : i32
    return %c0_i32, %c0_i32_0 : i32, i32
  }
  func.func @transform_3(%arg0: i32, %arg1: i32) -> (i32, i32) {
    %c0_i32 = arith.constant 0 : i32
    %c0_i32_0 = arith.constant 0 : i32
    %c0_i32_1 = arith.constant 0 : i32
    return %c0_i32, %c0_i32_0 : i32, i32
  }
  func.func @transform_4(%arg0: i32, %arg1: i32) -> (i32, i32) {
    %c0_i32 = arith.constant 0 : i32
    %c0_i32_0 = arith.constant 0 : i32
    %c0_i32_1 = arith.constant 0 : i32
    return %c0_i32, %c0_i32_0 : i32, i32
  }
  func.func @transform_5(%arg0: i32, %arg1: i32) -> (i32, i32) {
    %c0_i32 = arith.constant 0 : i32
    %c0_i32_0 = arith.constant 0 : i32
    %c0_i32_1 = arith.constant 0 : i32
    return %c0_i32, %c0_i32_0 : i32, i32
  }
  func.func @transform_6(%arg0: i32, %arg1: i32) -> (i32, i32) {
    %c0_i32 = arith.constant 0 : i32
    %c0_i32_0 = arith.constant 0 : i32
    %c0_i32_1 = arith.constant 0 : i32
    return %c0_i32, %c0_i32_0 : i32, i32
  }
  func.func @transform_7(%arg0: i32, %arg1: i32) -> (i32, i32, i32) {
    %c0_i32 = arith.constant 0 : i32
    %c0_i32_0 = arith.constant 0 : i32
    return %arg1, %arg0, %c0_i32 : i32, i32, i32
  }
  func.func @transform_8(%arg0: i32, %arg1: i32) -> (i32, i32, i32) {
    %c0_i32 = arith.constant 0 : i32
    %c0_i32_0 = arith.constant 0 : i32
    return %arg1, %arg0, %c0_i32 : i32, i32, i32
  }
}

</mosaic_0001>

<llo_original>
// kernel: tpu_custom_call.1
$region0: #{tpu_custom_call.1}
  #allocation0 [shape = 'u32[]', space=smem, size = 0x4, offset = 0x4, fixed_abs, tag = 'smem constant byte address 0x4 - core index']
  #allocation1 [shape = 'u32[144,128]{1,0:T(1,128)}', space=vmem, size = 0x12000, scoped, tag = 'internal scratch']
  #allocation2 [shape = 'f32[8,256]{1,0:T(8,128)}', space=vmem, size = 0x2000, scoped, tag = 'scratch operand']
  #allocation3 [shape = 'f32[8,8,256]{2,1,0:T(8,128)}', space=vmem, size = 0x10000, scoped, tag = 'scratch operand']
  %s0 = inlined_call_operand.vmem [shape: f32[8,8,64], index: 0, kind: input, shape index: {}]
  %s1 = inlined_call_operand.hbm [shape: f32[8,256], index: 1, kind: input, shape index: {}]
  %s2 = inlined_call_operand.vmem [shape: bf16[64,256], index: 2, kind: input, shape index: {}]
  %s3 = inlined_call_operand.vmem [shape: bf16[256,256], index: 3, kind: input, shape index: {}]
  %s4 = inlined_call_operand.vmem [shape: f32[1,256], index: 4, kind: input, shape index: {}]
  %s5 = inlined_call_operand.vmem [shape: f32[256,64], index: 5, kind: input, shape index: {}]
  %s6 = inlined_call_operand.vmem [shape: f32[1,64], index: 6, kind: input, shape index: {}]
  %s7 = inlined_call_operand.hbm [shape: f32[8,8,256], index: 7, kind: output, shape index: {0}]
  %s8 = inlined_call_operand.hbm [shape: f32[8,8,64], index: 8, kind: output, shape index: {1}]
  %9 = xla_tuple %s7, %s8
  %s10 = sld [smem:[#allocation0]]
  $region54: #{tpu_custom_call.1} parent=0
    _
  %s12 = ssub.s32 1, %s10
  %s13 = scalar_select 0, %s12, %s10
  $region1: #{tpu_custom_call.1} parent=0
    #allocation4 [shape = 'u8[8192]{0}', space=vmem, size = 0x2000, scoped, tag = 'input window, operand 1, single buffered']
    #allocation5 [shape = 's32[1]{0}', space=sflag, size = 0x4, scoped, tag = 'scoped memory for tpu_custom_call.1']
    #allocation6 [shape = 's32[1]{0}', space=sflag, size = 0x4, scoped, tag = 'scoped memory for tpu_custom_call.1']
    #allocation7 [shape = 'u8[65536]{0}', space=vmem, size = 0x10000, scoped, tag = 'output window, operand 0, single buffered']
    #allocation8 [shape = 'u8[32768]{0}', space=vmem, size = 0x8000, scoped, tag = 'output window, operand 1, single buffered']
    #allocation9 [shape = 's32[1]{0}', space=sflag, size = 0x4, scoped, tag = 'scoped memory for tpu_custom_call.1']
    %14 = vsyncpa [#allocation5], 0
    %15 = vsyncpa [#allocation6], 0
    %16 = vsyncpa [#allocation9], 0
    // Predicated region
    $region2: #{tpu_custom_call.1} parent=1 // pred_check
      _
    $region3: #{tpu_custom_call.1} parent=1 // pred_check_branch
      %18 = sbr.rel (0) target = $region5
    $region4: #{tpu_custom_call.1} parent=1 // pred_region
      _
    $region5: #{tpu_custom_call.1} parent=1 // pred_fallthru
      _
    // Predicated region
    $region6: #{tpu_custom_call.1} parent=1 // pred_check
      _
    $region7: #{tpu_custom_call.1} parent=1 // pred_check_branch
      %20 = sbr.rel (0) target = $region9
    $region8: #{tpu_custom_call.1} parent=1 // pred_region
      %s22 = ssub.s32 256, 256
      %23 = vsyncadd [#allocation5], %s22
      %s25 = sshll.u32 [#allocation4], 4
      %s26 = int_to_ptr.vmem [resolvable:$true] %s25
      %28 = dma.hbm_to_vmem [thread:$0]  %s1, 256, %s26, [#allocation5]
    $region9: #{tpu_custom_call.1} parent=1 // pred_fallthru
      _
    // Predicated region
    $region10: #{tpu_custom_call.1} parent=1 // pred_check
      _
    $region11: #{tpu_custom_call.1} parent=1 // pred_check_branch
      %30 = sbr.rel (0) target = $region13
    $region12: #{tpu_custom_call.1} parent=1 // pred_region
      _
    $region13: #{tpu_custom_call.1} parent=1 // pred_fallthru
      _
    // Predicated region
    $region14: #{tpu_custom_call.1} parent=1 // pred_check
      _
    $region15: #{tpu_custom_call.1} parent=1 // pred_check_branch
      %32 = sbr.rel (0) target = $region17
    $region16: #{tpu_custom_call.1} parent=1 // pred_region
      _
    $region17: #{tpu_custom_call.1} parent=1 // pred_fallthru
      _
    // Predicated region
    $region18: #{tpu_custom_call.1} parent=1 // pred_check
      _
    $region19: #{tpu_custom_call.1} parent=1 // pred_check_branch
      %34 = sbr.rel (0) target = $region21
    $region20: #{tpu_custom_call.1} parent=1 // pred_region
      _
    $region21: #{tpu_custom_call.1} parent=1 // pred_fallthru
      _
    // Predicated region
    $region22: #{tpu_custom_call.1} parent=1 // pred_check
      _
    $region23: #{tpu_custom_call.1} parent=1 // pred_check_branch
      %36 = sbr.rel (0) target = $region25
    $region24: #{tpu_custom_call.1} parent=1 // pred_region
      _
    $region25: #{tpu_custom_call.1} parent=1 // pred_fallthru
      _
    // Predicated region
    $region26: #{tpu_custom_call.1} parent=1 // pred_check
      _
    $region27: #{tpu_custom_call.1} parent=1 // pred_check_branch
      %38 = sbr.rel (0) target = $region29
    $region28: #{tpu_custom_call.1} parent=1 // pred_region
      _
    $region29: #{tpu_custom_call.1} parent=1 // pred_fallthru
      _
    // Predicated region
    $region30: #{tpu_custom_call.1} parent=1 // pred_check
      _
    $region31: #{tpu_custom_call.1} parent=1 // pred_check_branch
      %40 = sbr.rel (0) target = $region33
    $region32: #{tpu_custom_call.1} parent=1 // pred_region
      %41 = dma.done [#allocation5], 256
    $region33: #{tpu_custom_call.1} parent=1 // pred_fallthru
      _
    %p43 = scmp.eq.s32.totalorder 0, 0
    // Predicated region
    $region34: #{tpu_custom_call.1} parent=1 // pred_check
      %p44 = pneg %p43
    $region35: #{tpu_custom_call.1} parent=1 // pred_check_branch
      %46 = sbr.rel (%p44) target = $region37
    $region36: #{tpu_custom_call.1} parent=1 // pred_region
      %v47 = vld [vmem:[#allocation4] sm:$0xff]
      %v48 = vld [vmem:[#allocation4 + $0x8] sm:$0xff]
      %49 = vst [vmem:[#allocation2] sm:$0xff] %v47
      %50 = vst [vmem:[#allocation2 + $0x8] sm:$0xff] %v48
    $region37: #{tpu_custom_call.1} parent=1 // pred_fallthru
      _
    %v51 = vld [vmem:[%s0] sm:$0xff]
    %v52 = vld [vmem:[%s0 + $0x8] sm:$0xff]
    %v53 = vld [vmem:[%s0 + $0x10] sm:$0xff]
    %v54 = vld [vmem:[%s0 + $0x18] sm:$0xff]
    %v55 = vld [vmem:[%s0 + $0x20] sm:$0xff]
    %v56 = vld [vmem:[%s0 + $0x28] sm:$0xff]
    %v57 = vld [vmem:[%s0 + $0x30] sm:$0xff]
    %v58 = vld [vmem:[%s0 + $0x38] sm:$0xff]
    %v59 = vpack.c.bf16 %v52, %v51
    %v60 = vpack.c.bf16 %v54, %v53
    %v61 = vpack.c.bf16 %v56, %v55
    %v62 = vpack.c.bf16 %v58, %v57
    %v63 = vld [vmem:[%s2] sm:$0xff]
    %v64 = vld [vmem:[%s2 + $0x8] sm:$0xff]
    %v65 = vld [vmem:[%s2 + $0x10] sm:$0xff]
    %v66 = vld [vmem:[%s2 + $0x18] sm:$0xff]
    %v67 = vld [vmem:[%s2 + $0x20] sm:$0xff]
    %v68 = vld [vmem:[%s2 + $0x28] sm:$0xff]
    %v69 = vld [vmem:[%s2 + $0x30] sm:$0xff]
    %v70 = vld [vmem:[%s2 + $0x38] sm:$0xff]
    %v71 = vld [vmem:[%s4] sm:$0x3]
    %v73 = vlaneseq
    %v74 = vshrl.u32 %v73, 7
    %v75 = vsub.s32 0, %v74
    %v76 = vrot.slane %v71, %v75
    %v77 = vlaneseq
    %v78 = vshrl.u32 %v77, 7
    %v79 = vsub.s32 1, %v78
    %v80 = vrot.slane %v71, %v79
    %v91 = vunpack.c.l.b16 %v63
    %v92 = vunpack.c.h.b16 %v63
    %v93 = vunpack.c.l.b16 %v64
    %v94 = vunpack.c.h.b16 %v64
    %v95 = vunpack.c.l.b16 %v65
    %v96 = vunpack.c.h.b16 %v65
    %v97 = vunpack.c.l.b16 %v66
    %v98 = vunpack.c.h.b16 %v66
    %v99 = vunpack.c.l.b16 %v67
    %v100 = vunpack.c.h.b16 %v67
    %v101 = vunpack.c.l.b16 %v68
    %v102 = vunpack.c.h.b16 %v68
    %v103 = vunpack.c.l.b16 %v69
    %v104 = vunpack.c.h.b16 %v69
    %v105 = vunpack.c.l.b16 %v70
    %v106 = vunpack.c.h.b16 %v70
    %v107 = vpack.c.b16 %v93, %v91
    %v108 = vpack.c.b16 %v94, %v92
    %v109 = vpack.c.b16 %v97, %v95
    %v110 = vpack.c.b16 %v98, %v96
    %v111 = vpack.c.b16 %v101, %v99
    %v112 = vpack.c.b16 %v102, %v100
    %v113 = vpack.c.b16 %v105, %v103
    %v114 = vpack.c.b16 %v106, %v104
    %vm123 = vcmask 523264
    %v125 = vsel %vm123, %v59, 0
    %v128 = vsel %vm123, %v60, 0
    %v131 = vsel %vm123, %v61, 0
    %v134 = vsel %vm123, %v62, 0
    %136 = vmatprep.subr.bf16.mxu0 %v108
    %137 = vmatpush1.bf16.msra.mxu0 %v107
    %138 = vmatprep.subr.bf16.mxu0 %v110
    %139 = vmatpush1.bf16.msra.mxu0 %v109
    %140 = vmatprep.subr.bf16.mxu0 %v112
    %141 = vmatpush1.bf16.msra.mxu0 %v111
    %142 = vmatprep.subr.bf16.mxu0 %v114
    %143 = vmatpush1.bf16.msra.mxu0 %v113
    %144 = vmatprep.subr.bf16.mxu0 0
    %145 = vmatpush1.bf16.msra.mxu0 0
    %146 = vmatprep.subr.bf16.mxu0 0
    %147 = vmatpush1.bf16.msra.mxu0 0
    %148 = vmatprep.subr.bf16.mxu0 0
    %149 = vmatpush1.bf16.msra.mxu0 0
    %150 = vmatprep.subr.bf16.mxu0 0
    %151 = vmatpush1.bf16.msra.mxu0 0
    %152 = vmatprep.subr.bf16.mxu0 0
    %153 = vmatpush1.bf16.msra.mxu0 0
    %154 = vmatprep.subr.bf16.mxu0 0
    %155 = vmatpush1.bf16.msra.mxu0 0
    %156 = vmatprep.subr.bf16.mxu0 0
    %157 = vmatpush1.bf16.msra.mxu0 0
    %158 = vmatprep.subr.bf16.mxu0 0
    %159 = vmatpush1.bf16.msra.mxu0 0
    %160 = vmatprep.subr.bf16.mxu0 0
    %161 = vmatpush1.bf16.msra.mxu0 0
    %162 = vmatprep.subr.bf16.mxu0 0
    %163 = vmatpush1.bf16.msra.mxu0 0
    %164 = vmatprep.subr.bf16.mxu0 0
    %165 = vmatpush1.bf16.msra.mxu0 0
    %166 = vmatprep.subr.bf16.mxu0 0
    %167 = vmatpush1.bf16.msra.mxu0 0
    %168 = vmatprep.mubr.bf16.mxu0 0
    %169 = vmatmul.mubr.bf16.gmra.mrb[0].mxu0 %v125
    %v170 = vpop.f32.mrb[0].mxu0
    %v171 = vadd.f32 %v76, %v170
    %v172 = vpop.f32.mrb[0].mxu0
    %v173 = vadd.f32 %v80, %v172
    %v174 = vpop.f32.mrb[0].mxu0
    %v175 = vadd.f32 %v76, %v174
    %v176 = vpop.f32.mrb[0].mxu0
    %v177 = vadd.f32 %v80, %v176
    %178 = vmatprep.mubr.bf16.mxu0 0
    %179 = vmatmul.mubr.bf16.gmra.mrb[0].mxu0 %v128
    %v180 = vpop.f32.mrb[0].mxu0
    %v181 = vadd.f32 %v76, %v180
    %v182 = vpop.f32.mrb[0].mxu0
    %v183 = vadd.f32 %v80, %v182
    %v184 = vpop.f32.mrb[0].mxu0
    %v185 = vadd.f32 %v76, %v184
    %v186 = vpop.f32.mrb[0].mxu0
    %v187 = vadd.f32 %v80, %v186
    %188 = vmatprep.mubr.bf16.mxu0 0
    %189 = vmatmul.mubr.bf16.gmra.mrb[0].mxu0 %v131
    %v190 = vpop.f32.mrb[0].mxu0
    %v191 = vadd.f32 %v76, %v190
    %v192 = vpop.f32.mrb[0].mxu0
    %v193 = vadd.f32 %v80, %v192
    %v194 = vpop.f32.mrb[0].mxu0
    %v195 = vadd.f32 %v76, %v194
    %v196 = vpop.f32.mrb[0].mxu0
    %v197 = vadd.f32 %v80, %v196
    %198 = vmatprep.mubr.bf16.mxu0 0
    %199 = vmatmul.mubr.bf16.gmra.mrb[0].mxu0 %v134
    %v200 = vpop.f32.mrb[0].mxu0
    %v201 = vadd.f32 %v76, %v200
    %v202 = vpop.f32.mrb[0].mxu0
    %v203 = vadd.f32 %v80, %v202
    %v204 = vpop.f32.mrb[0].mxu0
    %v205 = vadd.f32 %v76, %v204
    %v206 = vpop.f32.mrb[0].mxu0
    %v207 = vadd.f32 %v80, %v206
    %208 = vdwg.mxu0
    %209 = vst [vmem:[#allocation3] sm:$0xff] %v171
    %210 = vst [vmem:[#allocation3 + $0x8] sm:$0xff] %v173
    %211 = vst [vmem:[#allocation3 + $0x10] sm:$0xff] %v175
    %212 = vst [vmem:[#allocation3 + $0x18] sm:$0xff] %v177
    %213 = vst [vmem:[#allocation3 + $0x20] sm:$0xff] %v181
    %214 = vst [vmem:[#allocation3 + $0x28] sm:$0xff] %v183
    %215 = vst [vmem:[#allocation3 + $0x30] sm:$0xff] %v185
    %216 = vst [vmem:[#allocation3 + $0x38] sm:$0xff] %v187
    %217 = vst [vmem:[#allocation3 + $0x40] sm:$0xff] %v191
    %218 = vst [vmem:[#allocation3 + $0x48] sm:$0xff] %v193
    %219 = vst [vmem:[#allocation3 + $0x50] sm:$0xff] %v195
    %220 = vst [vmem:[#allocation3 + $0x58] sm:$0xff] %v197
    %221 = vst [vmem:[#allocation3 + $0x60] sm:$0xff] %v201
    %222 = vst [vmem:[#allocation3 + $0x68] sm:$0xff] %v203
    %223 = vst [vmem:[#allocation3 + $0x70] sm:$0xff] %v205
    %224 = vst [vmem:[#allocation3 + $0x78] sm:$0xff] %v207
    %v225 = vld [vmem:[%s3] sm:$0xff]
    %v226 = vld [vmem:[%s3 + $0x8] sm:$0xff]
    %v227 = vld [vmem:[%s3 + $0x10] sm:$0xff]
    %v228 = vld [vmem:[%s3 + $0x18] sm:$0xff]
    %v229 = vld [vmem:[%s3 + $0x20] sm:$0xff]
    %v230 = vld [vmem:[%s3 + $0x28] sm:$0xff]
    %v231 = vld [vmem:[%s3 + $0x30] sm:$0xff]
    %v232 = vld [vmem:[%s3 + $0x38] sm:$0xff]
    %v233 = vld [vmem:[%s3 + $0x40] sm:$0xff]
    %v234 = vld [vmem:[%s3 + $0x48] sm:$0xff]
    %v235 = vld [vmem:[%s3 + $0x50] sm:$0xff]
    %v236 = vld [vmem:[%s3 + $0x58] sm:$0xff]
    %v237 = vld [vmem:[%s3 + $0x60] sm:$0xff]
    %v238 = vld [vmem:[%s3 + $0x68] sm:$0xff]
    %v239 = vld [vmem:[%s3 + $0x70] sm:$0xff]
    %v240 = vld [vmem:[%s3 + $0x78] sm:$0xff]
    %v241 = vld [vmem:[%s3 + $0x80] sm:$0xff]
    %v242 = vld [vmem:[%s3 + $0x88] sm:$0xff]
    %v243 = vld [vmem:[%s3 + $0x90] sm:$0xff]
    %v244 = vld [vmem:[%s3 + $0x98] sm:$0xff]
    %v245 = vld [vmem:[%s3 + $0xa0] sm:$0xff]
    %v246 = vld [vmem:[%s3 + $0xa8] sm:$0xff]
    %v247 = vld [vmem:[%s3 + $0xb0] sm:$0xff]
    %v248 = vld [vmem:[%s3 + $0xb8] sm:$0xff]
    %v249 = vld [vmem:[%s3 + $0xc0] sm:$0xff]
    %v250 = vld [vmem:[%s3 + $0xc8] sm:$0xff]
    %v251 = vld [vmem:[%s3 + $0xd0] sm:$0xff]
    %v252 = vld [vmem:[%s3 + $0xd8] sm:$0xff]
    %v253 = vld [vmem:[%s3 + $0xe0] sm:$0xff]
    %v254 = vld [vmem:[%s3 + $0xe8] sm:$0xff]
    %v255 = vld [vmem:[%s3 + $0xf0] sm:$0xff]
    %v256 = vld [vmem:[%s3 + $0xf8] sm:$0xff]
    %v257 = vld [vmem:[#allocation2] sm:$0xff]
    %v258 = vld [vmem:[#allocation2 + $0x8] sm:$0xff]
    %v259 = vld [vmem:[#allocation3] sm:$0xff]
    %v260 = vld [vmem:[#allocation3 + $0x8] sm:$0xff]
    %v261 = vpack.c.bf16 %v257, %v257
    %v262 = vpack.c.bf16 %v258, %v258
    %v295 = vunpack.c.l.b16 %v225
    %v296 = vunpack.c.h.b16 %v225
    %v297 = vunpack.c.l.b16 %v226
    %v298 = vunpack.c.h.b16 %v226
    %v299 = vunpack.c.l.b16 %v227
    %v300 = vunpack.c.h.b16 %v227
    %v301 = vunpack.c.l.b16 %v228
    %v302 = vunpack.c.h.b16 %v228
    %v303 = vunpack.c.l.b16 %v229
    %v304 = vunpack.c.h.b16 %v229
    %v305 = vunpack.c.l.b16 %v230
    %v306 = vunpack.c.h.b16 %v230
    %v307 = vunpack.c.l.b16 %v231
    %v308 = vunpack.c.h.b16 %v231
    %v309 = vunpack.c.l.b16 %v232
    %v310 = vunpack.c.h.b16 %v232
    %v311 = vunpack.c.l.b16 %v233
    %v312 = vunpack.c.h.b16 %v233
    %v313 = vunpack.c.l.b16 %v234
    %v314 = vunpack.c.h.b16 %v234
    %v315 = vunpack.c.l.b16 %v235
    %v316 = vunpack.c.h.b16 %v235
    %v317 = vunpack.c.l.b16 %v236
    %v318 = vunpack.c.h.b16 %v236
    %v319 = vunpack.c.l.b16 %v237
    %v320 = vunpack.c.h.b16 %v237
    %v321 = vunpack.c.l.b16 %v238
    %v322 = vunpack.c.h.b16 %v238
    %v323 = vunpack.c.l.b16 %v239
    %v324 = vunpack.c.h.b16 %v239
    %v325 = vunpack.c.l.b16 %v240
    %v326 = vunpack.c.h.b16 %v240
    %v327 = vunpack.c.l.b16 %v241
    %v328 = vunpack.c.h.b16 %v241
    %v329 = vunpack.c.l.b16 %v242
    %v330 = vunpack.c.h.b16 %v242
    %v331 = vunpack.c.l.b16 %v243
    %v332 = vunpack.c.h.b16 %v243
    %v333 = vunpack.c.l.b16 %v244
    %v334 = vunpack.c.h.b16 %v244
    %v335 = vunpack.c.l.b16 %v245
    %v336 = vunpack.c.h.b16 %v245
    %v337 = vunpack.c.l.b16 %v246
    %v338 = vunpack.c.h.b16 %v246
    %v339 = vunpack.c.l.b16 %v247
    %v340 = vunpack.c.h.b16 %v247
    %v341 = vunpack.c.l.b16 %v248
    %v342 = vunpack.c.h.b16 %v248
    %v343 = vunpack.c.l.b16 %v249
    %v344 = vunpack.c.h.b16 %v249
    %v345 = vunpack.c.l.b16 %v250
    %v346 = vunpack.c.h.b16 %v250
    %v347 = vunpack.c.l.b16 %v251
    %v348 = vunpack.c.h.b16 %v251
    %v349 = vunpack.c.l.b16 %v252
    %v350 = vunpack.c.h.b16 %v252
    %v351 = vunpack.c.l.b16 %v253
    %v352 = vunpack.c.h.b16 %v253
    %v353 = vunpack.c.l.b16 %v254
    %v354 = vunpack.c.h.b16 %v254
    %v355 = vunpack.c.l.b16 %v255
    %v356 = vunpack.c.h.b16 %v255
    %v357 = vunpack.c.l.b16 %v256
    %v358 = vunpack.c.h.b16 %v256
    %v359 = vpack.c.b16 %v297, %v295
    %v360 = vpack.c.b16 %v298, %v296
    %v361 = vpack.c.b16 %v301, %v299
    %v362 = vpack.c.b16 %v302, %v300
    %v363 = vpack.c.b16 %v305, %v303
    %v364 = vpack.c.b16 %v306, %v304
    %v365 = vpack.c.b16 %v309, %v307
    %v366 = vpack.c.b16 %v310, %v308
    %v367 = vpack.c.b16 %v313, %v311
    %v368 = vpack.c.b16 %v314, %v312
    %v369 = vpack.c.b16 %v317, %v315
    %v370 = vpack.c.b16 %v318, %v316
    %v371 = vpack.c.b16 %v321, %v319
    %v372 = vpack.c.b16 %v322, %v320
    %v373 = vpack.c.b16 %v325, %v323
    %v374 = vpack.c.b16 %v326, %v324
    %v375 = vpack.c.b16 %v329, %v327
    %v376 = vpack.c.b16 %v330, %v328
    %v377 = vpack.c.b16 %v333, %v331
    %v378 = vpack.c.b16 %v334, %v332
    %v379 = vpack.c.b16 %v337, %v335
    %v380 = vpack.c.b16 %v338, %v336
    %v381 = vpack.c.b16 %v341, %v339
    %v382 = vpack.c.b16 %v342, %v340
    %v383 = vpack.c.b16 %v345, %v343
    %v384 = vpack.c.b16 %v346, %v344
    %v385 = vpack.c.b16 %v349, %v347
    %v386 = vpack.c.b16 %v350, %v348
    %v387 = vpack.c.b16 %v353, %v351
    %v388 = vpack.c.b16 %v354, %v352
    %v389 = vpack.c.b16 %v357, %v355
    %v390 = vpack.c.b16 %v358, %v356
    %423 = vmatprep.subr.bf16.mxu0 %v360
    %424 = vmatpush1.bf16.msra.mxu0 %v359
    %425 = vmatprep.subr.bf16.mxu0 %v362
    %426 = vmatpush1.bf16.msra.mxu0 %v361
    %427 = vmatprep.subr.bf16.mxu0 %v364
    %428 = vmatpush1.bf16.msra.mxu0 %v363
    %429 = vmatprep.subr.bf16.mxu0 %v366
    %430 = vmatpush1.bf16.msra.mxu0 %v365
    %431 = vmatprep.subr.bf16.mxu0 %v368
    %432 = vmatpush1.bf16.msra.mxu0 %v367
    %433 = vmatprep.subr.bf16.mxu0 %v370
    %434 = vmatpush1.bf16.msra.mxu0 %v369
    %435 = vmatprep.subr.bf16.mxu0 %v372
    %436 = vmatpush1.bf16.msra.mxu0 %v371
    %437 = vmatprep.subr.bf16.mxu0 %v374
    %438 = vmatpush1.bf16.msra.mxu0 %v373
    %439 = vmatprep.subr.bf16.mxu0 %v376
    %440 = vmatpush1.bf16.msra.mxu0 %v375
    %441 = vmatprep.subr.bf16.mxu0 %v378
    %442 = vmatpush1.bf16.msra.mxu0 %v377
    %443 = vmatprep.subr.bf16.mxu0 %v380
    %444 = vmatpush1.bf16.msra.mxu0 %v379
    %445 = vmatprep.subr.bf16.mxu0 %v382
    %446 = vmatpush1.bf16.msra.mxu0 %v381
    %447 = vmatprep.subr.bf16.mxu0 %v384
    %448 = vmatpush1.bf16.msra.mxu0 %v383
    %449 = vmatprep.subr.bf16.mxu0 %v386
    %450 = vmatpush1.bf16.msra.mxu0 %v385
    %451 = vmatprep.subr.bf16.mxu0 %v388
    %452 = vmatpush1.bf16.msra.mxu0 %v387
    %453 = vmatprep.subr.bf16.mxu0 %v390
    %454 = vmatpush1.bf16.msra.mxu0 %v389
    %455 = vmatprep.mubr.bf16.mxu0 %v262
    %456 = vmatmul.mubr.bf16.gmra.mrb[0].mxu0 %v261
    %v457 = vpop.f32.mrb[0].mxu0
    %v458 = vadd.f32 0.0, %v457
    %v459 = vpop.f32.mrb[0].mxu0
    %v460 = vadd.f32 0.0, %v459
    %v461 = vpop.f32.mrb[0].mxu0
    %v462 = vpop.f32.mrb[0].mxu0
    %463 = vdwg.mxu0
    %v464 = vadd.f32 %v259, %v458
    %v465 = vadd.f32 %v260, %v460
    %v466 = vtanh.pop %v464
    %v467 = vtanh.pop %v465
    %468 = vst [vmem:[#allocation7] sm:$0xff] %v466
    %469 = vst [vmem:[#allocation7 + $0x8] sm:$0xff] %v467
    %s470 = scalar_lea.vmem [#allocation3], 16
    %v471 = vld [vmem:[%s470] sm:$0xff]
    %v472 = vld [vmem:[%s470 + $0x8] sm:$0xff]
    %v473 = vpack.c.bf16 %v466, %v466
    %v474 = vpack.c.bf16 %v467, %v467
    %475 = vmatprep.subr.bf16.mxu0 %v360
    %476 = vmatpush1.bf16.msra.mxu0 %v359
    %477 = vmatprep.subr.bf16.mxu0 %v362
    %478 = vmatpush1.bf16.msra.mxu0 %v361
    %479 = vmatprep.subr.bf16.mxu0 %v364
    %480 = vmatpush1.bf16.msra.mxu0 %v363
    %481 = vmatprep.subr.bf16.mxu0 %v366
    %482 = vmatpush1.bf16.msra.mxu0 %v365
    %483 = vmatprep.subr.bf16.mxu0 %v368
    %484 = vmatpush1.bf16.msra.mxu0 %v367
    %485 = vmatprep.subr.bf16.mxu0 %v370
    %486 = vmatpush1.bf16.msra.mxu0 %v369
    %487 = vmatprep.subr.bf16.mxu0 %v372
    %488 = vmatpush1.bf16.msra.mxu0 %v371
    %489 = vmatprep.subr.bf16.mxu0 %v374
    %490 = vmatpush1.bf16.msra.mxu0 %v373
    %491 = vmatprep.subr.bf16.mxu0 %v376
    %492 = vmatpush1.bf16.msra.mxu0 %v375
    %493 = vmatprep.subr.bf16.mxu0 %v378
    %494 = vmatpush1.bf16.msra.mxu0 %v377
    %495 = vmatprep.subr.bf16.mxu0 %v380
    %496 = vmatpush1.bf16.msra.mxu0 %v379
    %497 = vmatprep.subr.bf16.mxu0 %v382
    %498 = vmatpush1.bf16.msra.mxu0 %v381
    %499 = vmatprep.subr.bf16.mxu0 %v384
    %500 = vmatpush1.bf16.msra.mxu0 %v383
    %501 = vmatprep.subr.bf16.mxu0 %v386
    %502 = vmatpush1.bf16.msra.mxu0 %v385
    %503 = vmatprep.subr.bf16.mxu0 %v388
    %504 = vmatpush1.bf16.msra.mxu0 %v387
    %505 = vmatprep.subr.bf16.mxu0 %v390
    %506 = vmatpush1.bf16.msra.mxu0 %v389
    %507 = vmatprep.mubr.bf16.mxu0 %v474
    %508 = vmatmul.mubr.bf16.gmra.mrb[0].mxu0 %v473
    %v509 = vpop.f32.mrb[0].mxu0
    %v510 = vadd.f32 0.0, %v509
    %v511 = vpop.f32.mrb[0].mxu0
    %v512 = vadd.f32 0.0, %v511
    %v513 = vpop.f32.mrb[0].mxu0
    %v514 = vpop.f32.mrb[0].mxu0
    %515 = vdwg.mxu0
    %v516 = vadd.f32 %v471, %v510
    %v517 = vadd.f32 %v472, %v512
    %v518 = vtanh.pop %v516
    %v519 = vtanh.pop %v517
    %s520 = scalar_lea.vmem [#allocation7], 16
    %521 = vst [vmem:[%s520] sm:$0xff] %v518
    %522 = vst [vmem:[%s520 + $0x8] sm:$0xff] %v519
    %s523 = scalar_lea.vmem [#allocation3], 32
    %v524 = vld [vmem:[%s523] sm:$0xff]
    %v525 = vld [vmem:[%s523 + $0x8] sm:$0xff]
    %v526 = vpack.c.bf16 %v518, %v518
    %v527 = vpack.c.bf16 %v519, %v519
    %528 = vmatprep.subr.bf16.mxu0 %v360
    %529 = vmatpush1.bf16.msra.mxu0 %v359
    %530 = vmatprep.subr.bf16.mxu0 %v362
    %531 = vmatpush1.bf16.msra.mxu0 %v361
    %532 = vmatprep.subr.bf16.mxu0 %v364
    %533 = vmatpush1.bf16.msra.mxu0 %v363
    %534 = vmatprep.subr.bf16.mxu0 %v366
    %535 = vmatpush1.bf16.msra.mxu0 %v365
    %536 = vmatprep.subr.bf16.mxu0 %v368
    %537 = vmatpush1.bf16.msra.mxu0 %v367
    %538 = vmatprep.subr.bf16.mxu0 %v370
    %539 = vmatpush1.bf16.msra.mxu0 %v369
    %540 = vmatprep.subr.bf16.mxu0 %v372
    %541 = vmatpush1.bf16.msra.mxu0 %v371
    %542 = vmatprep.subr.bf16.mxu0 %v374
    %543 = vmatpush1.bf16.msra.mxu0 %v373
    %544 = vmatprep.subr.bf16.mxu0 %v376
    %545 = vmatpush1.bf16.msra.mxu0 %v375
    %546 = vmatprep.subr.bf16.mxu0 %v378
    %547 = vmatpush1.bf16.msra.mxu0 %v377
    %548 = vmatprep.subr.bf16.mxu0 %v380
    %549 = vmatpush1.bf16.msra.mxu0 %v379
    %550 = vmatprep.subr.bf16.mxu0 %v382
    %551 = vmatpush1.bf16.msra.mxu0 %v381
    %552 = vmatprep.subr.bf16.mxu0 %v384
    %553 = vmatpush1.bf16.msra.mxu0 %v383
    %554 = vmatprep.subr.bf16.mxu0 %v386
    %555 = vmatpush1.bf16.msra.mxu0 %v385
    %556 = vmatprep.subr.bf16.mxu0 %v388
    %557 = vmatpush1.bf16.msra.mxu0 %v387
    %558 = vmatprep.subr.bf16.mxu0 %v390
    %559 = vmatpush1.bf16.msra.mxu0 %v389
    %560 = vmatprep.mubr.bf16.mxu0 %v527
    %561 = vmatmul.mubr.bf16.gmra.mrb[0].mxu0 %v526
    %v562 = vpop.f32.mrb[0].mxu0
    %v563 = vadd.f32 0.0, %v562
    %v564 = vpop.f32.mrb[0].mxu0
    %v565 = vadd.f32 0.0, %v564
    %v566 = vpop.f32.mrb[0].mxu0
    %v567 = vpop.f32.mrb[0].mxu0
    %568 = vdwg.mxu0
    %v569 = vadd.f32 %v524, %v563
    %v570 = vadd.f32 %v525, %v565
    %v571 = vtanh.pop %v569
    %v572 = vtanh.pop %v570
    %s573 = scalar_lea.vmem [#allocation7], 32
    %574 = vst [vmem:[%s573] sm:$0xff] %v571
    %575 = vst [vmem:[%s573 + $0x8] sm:$0xff] %v572
    %s576 = scalar_lea.vmem [#allocation3], 48
    %v577 = vld [vmem:[%s576] sm:$0xff]
    %v578 = vld [vmem:[%s576 + $0x8] sm:$0xff]
    %v579 = vpack.c.bf16 %v571, %v571
    %v580 = vpack.c.bf16 %v572, %v572
    %581 = vmatprep.subr.bf16.mxu0 %v360
    %582 = vmatpush1.bf16.msra.mxu0 %v359
    %583 = vmatprep.subr.bf16.mxu0 %v362
    %584 = vmatpush1.bf16.msra.mxu0 %v361
    %585 = vmatprep.subr.bf16.mxu0 %v364
    %586 = vmatpush1.bf16.msra.mxu0 %v363
    %587 = vmatprep.subr.bf16.mxu0 %v366
    %588 = vmatpush1.bf16.msra.mxu0 %v365
    %589 = vmatprep.subr.bf16.mxu0 %v368
    %590 = vmatpush1.bf16.msra.mxu0 %v367
    %591 = vmatprep.subr.bf16.mxu0 %v370
    %592 = vmatpush1.bf16.msra.mxu0 %v369
    %593 = vmatprep.subr.bf16.mxu0 %v372
    %594 = vmatpush1.bf16.msra.mxu0 %v371
    %595 = vmatprep.subr.bf16.mxu0 %v374
    %596 = vmatpush1.bf16.msra.mxu0 %v373
    %597 = vmatprep.subr.bf16.mxu0 %v376
    %598 = vmatpush1.bf16.msra.mxu0 %v375
    %599 = vmatprep.subr.bf16.mxu0 %v378
    %600 = vmatpush1.bf16.msra.mxu0 %v377
    %601 = vmatprep.subr.bf16.mxu0 %v380
    %602 = vmatpush1.bf16.msra.mxu0 %v379
    %603 = vmatprep.subr.bf16.mxu0 %v382
    %604 = vmatpush1.bf16.msra.mxu0 %v381
    %605 = vmatprep.subr.bf16.mxu0 %v384
    %606 = vmatpush1.bf16.msra.mxu0 %v383
    %607 = vmatprep.subr.bf16.mxu0 %v386
    %608 = vmatpush1.bf16.msra.mxu0 %v385
    %609 = vmatprep.subr.bf16.mxu0 %v388
    %610 = vmatpush1.bf16.msra.mxu0 %v387
    %611 = vmatprep.subr.bf16.mxu0 %v390
    %612 = vmatpush1.bf16.msra.mxu0 %v389
    %613 = vmatprep.mubr.bf16.mxu0 %v580
    %614 = vmatmul.mubr.bf16.gmra.mrb[0].mxu0 %v579
    %v615 = vpop.f32.mrb[0].mxu0
    %v616 = vadd.f32 0.0, %v615
    %v617 = vpop.f32.mrb[0].mxu0
    %v618 = vadd.f32 0.0, %v617
    %v619 = vpop.f32.mrb[0].mxu0
    %v620 = vpop.f32.mrb[0].mxu0
    %621 = vdwg.mxu0
    %v622 = vadd.f32 %v577, %v616
    %v623 = vadd.f32 %v578, %v618
    %v624 = vtanh.pop %v622
    %v625 = vtanh.pop %v623
    %s626 = scalar_lea.vmem [#allocation7], 48
    %627 = vst [vmem:[%s626] sm:$0xff] %v624
    %628 = vst [vmem:[%s626 + $0x8] sm:$0xff] %v625
    %s629 = scalar_lea.vmem [#allocation3], 64
    %v630 = vld [vmem:[%s629] sm:$0xff]
    %v631 = vld [vmem:[%s629 + $0x8] sm:$0xff]
    %v632 = vpack.c.bf16 %v624, %v624
    %v633 = vpack.c.bf16 %v625, %v625
    %634 = vmatprep.subr.bf16.mxu0 %v360
    %635 = vmatpush1.bf16.msra.mxu0 %v359
    %636 = vmatprep.subr.bf16.mxu0 %v362
    %637 = vmatpush1.bf16.msra.mxu0 %v361
    %638 = vmatprep.subr.bf16.mxu0 %v364
    %639 = vmatpush1.bf16.msra.mxu0 %v363
    %640 = vmatprep.subr.bf16.mxu0 %v366
    %641 = vmatpush1.bf16.msra.mxu0 %v365
    %642 = vmatprep.subr.bf16.mxu0 %v368
    %643 = vmatpush1.bf16.msra.mxu0 %v367
    %644 = vmatprep.subr.bf16.mxu0 %v370
    %645 = vmatpush1.bf16.msra.mxu0 %v369
    %646 = vmatprep.subr.bf16.mxu0 %v372
    %647 = vmatpush1.bf16.msra.mxu0 %v371
    %648 = vmatprep.subr.bf16.mxu0 %v374
    %649 = vmatpush1.bf16.msra.mxu0 %v373
    %650 = vmatprep.subr.bf16.mxu0 %v376
    %651 = vmatpush1.bf16.msra.mxu0 %v375
    %652 = vmatprep.subr.bf16.mxu0 %v378
    %653 = vmatpush1.bf16.msra.mxu0 %v377
    %654 = vmatprep.subr.bf16.mxu0 %v380
    %655 = vmatpush1.bf16.msra.mxu0 %v379
    %656 = vmatprep.subr.bf16.mxu0 %v382
    %657 = vmatpush1.bf16.msra.mxu0 %v381
    %658 = vmatprep.subr.bf16.mxu0 %v384
    %659 = vmatpush1.bf16.msra.mxu0 %v383
    %660 = vmatprep.subr.bf16.mxu0 %v386
    %661 = vmatpush1.bf16.msra.mxu0 %v385
    %662 = vmatprep.subr.bf16.mxu0 %v388
    %663 = vmatpush1.bf16.msra.mxu0 %v387
    %664 = vmatprep.subr.bf16.mxu0 %v390
    %665 = vmatpush1.bf16.msra.mxu0 %v389
    %666 = vmatprep.mubr.bf16.mxu0 %v633
    %667 = vmatmul.mubr.bf16.gmra.mrb[0].mxu0 %v632
    %v668 = vpop.f32.mrb[0].mxu0
    %v669 = vadd.f32 0.0, %v668
    %v670 = vpop.f32.mrb[0].mxu0
    %v671 = vadd.f32 0.0, %v670
    %v672 = vpop.f32.mrb[0].mxu0
    %v673 = vpop.f32.mrb[0].mxu0
    %674 = vdwg.mxu0
    %v675 = vadd.f32 %v630, %v669
    %v676 = vadd.f32 %v631, %v671
    %v677 = vtanh.pop %v675
    %v678 = vtanh.pop %v676
    %s679 = scalar_lea.vmem [#allocation7], 64
    %680 = vst [vmem:[%s679] sm:$0xff] %v677
    %681 = vst [vmem:[%s679 + $0x8] sm:$0xff] %v678
    %s682 = scalar_lea.vmem [#allocation3], 80
    %v683 = vld [vmem:[%s682] sm:$0xff]
    %v684 = vld [vmem:[%s682 + $0x8] sm:$0xff]
    %v685 = vpack.c.bf16 %v677, %v677
    %v686 = vpack.c.bf16 %v678, %v678
    %687 = vmatprep.subr.bf16.mxu0 %v360
    %688 = vmatpush1.bf16.msra.mxu0 %v359
    %689 = vmatprep.subr.bf16.mxu0 %v362
    %690 = vmatpush1.bf16.msra.mxu0 %v361
    %691 = vmatprep.subr.bf16.mxu0 %v364
    %692 = vmatpush1.bf16.msra.mxu0 %v363
    %693 = vmatprep.subr.bf16.mxu0 %v366
    %694 = vmatpush1.bf16.msra.mxu0 %v365
    %695 = vmatprep.subr.bf16.mxu0 %v368
    %696 = vmatpush1.bf16.msra.mxu0 %v367
    %697 = vmatprep.subr.bf16.mxu0 %v370
    %698 = vmatpush1.bf16.msra.mxu0 %v369
    %699 = vmatprep.subr.bf16.mxu0 %v372
    %700 = vmatpush1.bf16.msra.mxu0 %v371
    %701 = vmatprep.subr.bf16.mxu0 %v374
    %702 = vmatpush1.bf16.msra.mxu0 %v373
    %703 = vmatprep.subr.bf16.mxu0 %v376
    %704 = vmatpush1.bf16.msra.mxu0 %v375
    %705 = vmatprep.subr.bf16.mxu0 %v378
    %706 = vmatpush1.bf16.msra.mxu0 %v377
    %707 = vmatprep.subr.bf16.mxu0 %v380
    %708 = vmatpush1.bf16.msra.mxu0 %v379
    %709 = vmatprep.subr.bf16.mxu0 %v382
    %710 = vmatpush1.bf16.msra.mxu0 %v381
    %711 = vmatprep.subr.bf16.mxu0 %v384
    %712 = vmatpush1.bf16.msra.mxu0 %v383
    %713 = vmatprep.subr.bf16.mxu0 %v386
    %714 = vmatpush1.bf16.msra.mxu0 %v385
    %715 = vmatprep.subr.bf16.mxu0 %v388
    %716 = vmatpush1.bf16.msra.mxu0 %v387
    %717 = vmatprep.subr.bf16.mxu0 %v390
    %718 = vmatpush1.bf16.msra.mxu0 %v389
    %719 = vmatprep.mubr.bf16.mxu0 %v686
    %720 = vmatmul.mubr.bf16.gmra.mrb[0].mxu0 %v685
    %v721 = vpop.f32.mrb[0].mxu0
    %v722 = vadd.f32 0.0, %v721
    %v723 = vpop.f32.mrb[0].mxu0
    %v724 = vadd.f32 0.0, %v723
    %v725 = vpop.f32.mrb[0].mxu0
    %v726 = vpop.f32.mrb[0].mxu0
    %727 = vdwg.mxu0
    %v728 = vadd.f32 %v683, %v722
    %v729 = vadd.f32 %v684, %v724
    %v730 = vtanh.pop %v728
    %v731 = vtanh.pop %v729
    %s732 = scalar_lea.vmem [#allocation7], 80
    %733 = vst [vmem:[%s732] sm:$0xff] %v730
    %734 = vst [vmem:[%s732 + $0x8] sm:$0xff] %v731
    %s735 = scalar_lea.vmem [#allocation3], 96
    %v736 = vld [vmem:[%s735] sm:$0xff]
    %v737 = vld [vmem:[%s735 + $0x8] sm:$0xff]
    %v738 = vpack.c.bf16 %v730, %v730
    %v739 = vpack.c.bf16 %v731, %v731
    %740 = vmatprep.subr.bf16.mxu0 %v360
    %741 = vmatpush1.bf16.msra.mxu0 %v359
    %742 = vmatprep.subr.bf16.mxu0 %v362
    %743 = vmatpush1.bf16.msra.mxu0 %v361
    %744 = vmatprep.subr.bf16.mxu0 %v364
    %745 = vmatpush1.bf16.msra.mxu0 %v363
    %746 = vmatprep.subr.bf16.mxu0 %v366
    %747 = vmatpush1.bf16.msra.mxu0 %v365
    %748 = vmatprep.subr.bf16.mxu0 %v368
    %749 = vmatpush1.bf16.msra.mxu0 %v367
    %750 = vmatprep.subr.bf16.mxu0 %v370
    %751 = vmatpush1.bf16.msra.mxu0 %v369
    %752 = vmatprep.subr.bf16.mxu0 %v372
    %753 = vmatpush1.bf16.msra.mxu0 %v371
    %754 = vmatprep.subr.bf16.mxu0 %v374
    %755 = vmatpush1.bf16.msra.mxu0 %v373
    %756 = vmatprep.subr.bf16.mxu0 %v376
    %757 = vmatpush1.bf16.msra.mxu0 %v375
    %758 = vmatprep.subr.bf16.mxu0 %v378
    %759 = vmatpush1.bf16.msra.mxu0 %v377
    %760 = vmatprep.subr.bf16.mxu0 %v380
    %761 = vmatpush1.bf16.msra.mxu0 %v379
    %762 = vmatprep.subr.bf16.mxu0 %v382
    %763 = vmatpush1.bf16.msra.mxu0 %v381
    %764 = vmatprep.subr.bf16.mxu0 %v384
    %765 = vmatpush1.bf16.msra.mxu0 %v383
    %766 = vmatprep.subr.bf16.mxu0 %v386
    %767 = vmatpush1.bf16.msra.mxu0 %v385
    %768 = vmatprep.subr.bf16.mxu0 %v388
    %769 = vmatpush1.bf16.msra.mxu0 %v387
    %770 = vmatprep.subr.bf16.mxu0 %v390
    %771 = vmatpush1.bf16.msra.mxu0 %v389
    %772 = vmatprep.mubr.bf16.mxu0 %v739
    %773 = vmatmul.mubr.bf16.gmra.mrb[0].mxu0 %v738
    %v774 = vpop.f32.mrb[0].mxu0
    %v775 = vadd.f32 0.0, %v774
    %v776 = vpop.f32.mrb[0].mxu0
    %v777 = vadd.f32 0.0, %v776
    %v778 = vpop.f32.mrb[0].mxu0
    %v779 = vpop.f32.mrb[0].mxu0
    %780 = vdwg.mxu0
    %v781 = vadd.f32 %v736, %v775
    %v782 = vadd.f32 %v737, %v777
    %v783 = vtanh.pop %v781
    %v784 = vtanh.pop %v782
    %s785 = scalar_lea.vmem [#allocation7], 96
    %786 = vst [vmem:[%s785] sm:$0xff] %v783
    %787 = vst [vmem:[%s785 + $0x8] sm:$0xff] %v784
    %s788 = scalar_lea.vmem [#allocation3], 112
    %v789 = vld [vmem:[%s788] sm:$0xff]
    %v790 = vld [vmem:[%s788 + $0x8] sm:$0xff]
    %v791 = vpack.c.bf16 %v783, %v783
    %v792 = vpack.c.bf16 %v784, %v784
    %793 = vmatprep.subr.bf16.mxu0 %v360
    %794 = vmatpush1.bf16.msra.mxu0 %v359
    %795 = vmatprep.subr.bf16.mxu0 %v362
    %796 = vmatpush1.bf16.msra.mxu0 %v361
    %797 = vmatprep.subr.bf16.mxu0 %v364
    %798 = vmatpush1.bf16.msra.mxu0 %v363
    %799 = vmatprep.subr.bf16.mxu0 %v366
    %800 = vmatpush1.bf16.msra.mxu0 %v365
    %801 = vmatprep.subr.bf16.mxu0 %v368
    %802 = vmatpush1.bf16.msra.mxu0 %v367
    %803 = vmatprep.subr.bf16.mxu0 %v370
    %804 = vmatpush1.bf16.msra.mxu0 %v369
    %805 = vmatprep.subr.bf16.mxu0 %v372
    %806 = vmatpush1.bf16.msra.mxu0 %v371
    %807 = vmatprep.subr.bf16.mxu0 %v374
    %808 = vmatpush1.bf16.msra.mxu0 %v373
    %809 = vmatprep.subr.bf16.mxu0 %v376
    %810 = vmatpush1.bf16.msra.mxu0 %v375
    %811 = vmatprep.subr.bf16.mxu0 %v378
    %812 = vmatpush1.bf16.msra.mxu0 %v377
    %813 = vmatprep.subr.bf16.mxu0 %v380
    %814 = vmatpush1.bf16.msra.mxu0 %v379
    %815 = vmatprep.subr.bf16.mxu0 %v382
    %816 = vmatpush1.bf16.msra.mxu0 %v381
    %817 = vmatprep.subr.bf16.mxu0 %v384
    %818 = vmatpush1.bf16.msra.mxu0 %v383
    %819 = vmatprep.subr.bf16.mxu0 %v386
    %820 = vmatpush1.bf16.msra.mxu0 %v385
    %821 = vmatprep.subr.bf16.mxu0 %v388
    %822 = vmatpush1.bf16.msra.mxu0 %v387
    %823 = vmatprep.subr.bf16.mxu0 %v390
    %824 = vmatpush1.bf16.msra.mxu0 %v389
    %825 = vmatprep.mubr.bf16.mxu0 %v792
    %826 = vmatmul.mubr.bf16.gmra.mrb[0].mxu0 %v791
    %v827 = vpop.f32.mrb[0].mxu0
    %v828 = vadd.f32 0.0, %v827
    %v829 = vpop.f32.mrb[0].mxu0
    %v830 = vadd.f32 0.0, %v829
    %v831 = vpop.f32.mrb[0].mxu0
    %v832 = vpop.f32.mrb[0].mxu0
    %833 = vdwg.mxu0
    %v834 = vadd.f32 %v789, %v828
    %v835 = vadd.f32 %v790, %v830
    %v836 = vtanh.pop %v834
    %v837 = vtanh.pop %v835
    %s838 = scalar_lea.vmem [#allocation7], 112
    %839 = vst [vmem:[%s838] sm:$0xff] %v836
    %840 = vst [vmem:[%s838 + $0x8] sm:$0xff] %v837
    %841 = vst [vmem:[#allocation2] sm:$0xff] %v836
    %842 = vst [vmem:[#allocation2 + $0x8] sm:$0xff] %v837
    %v843 = vld [vmem:[#allocation7] sm:$0xff]
    %v844 = vld [vmem:[#allocation7 + $0x8] sm:$0xff]
    %v845 = vld [vmem:[#allocation7 + $0x10] sm:$0xff]
    %v846 = vld [vmem:[#allocation7 + $0x18] sm:$0xff]
    %v847 = vld [vmem:[#allocation7 + $0x20] sm:$0xff]
    %v848 = vld [vmem:[#allocation7 + $0x28] sm:$0xff]
    %v849 = vld [vmem:[#allocation7 + $0x30] sm:$0xff]
    %v850 = vld [vmem:[#allocation7 + $0x38] sm:$0xff]
    %v851 = vld [vmem:[#allocation7 + $0x40] sm:$0xff]
    %v852 = vld [vmem:[#allocation7 + $0x48] sm:$0xff]
    %v853 = vld [vmem:[#allocation7 + $0x50] sm:$0xff]
    %v854 = vld [vmem:[#allocation7 + $0x58] sm:$0xff]
    %v855 = vld [vmem:[#allocation7 + $0x60] sm:$0xff]
    %v856 = vld [vmem:[#allocation7 + $0x68] sm:$0xff]
    %v857 = vld [vmem:[#allocation7 + $0x70] sm:$0xff]
    %v858 = vld [vmem:[#allocation7 + $0x78] sm:$0xff]
    %v859 = vld [vmem:[%s5] sm:$0xff]
    %v860 = vld [vmem:[%s5 + $0x8] sm:$0xff]
    %v861 = vld [vmem:[%s5 + $0x10] sm:$0xff]
    %v862 = vld [vmem:[%s5 + $0x18] sm:$0xff]
    %v863 = vld [vmem:[%s5 + $0x20] sm:$0xff]
    %v864 = vld [vmem:[%s5 + $0x28] sm:$0xff]
    %v865 = vld [vmem:[%s5 + $0x30] sm:$0xff]
    %v866 = vld [vmem:[%s5 + $0x38] sm:$0xff]
    %v867 = vld [vmem:[%s5 + $0x40] sm:$0xff]
    %v868 = vld [vmem:[%s5 + $0x48] sm:$0xff]
    %v869 = vld [vmem:[%s5 + $0x50] sm:$0xff]
    %v870 = vld [vmem:[%s5 + $0x58] sm:$0xff]
    %v871 = vld [vmem:[%s5 + $0x60] sm:$0xff]
    %v872 = vld [vmem:[%s5 + $0x68] sm:$0xff]
    %v873 = vld [vmem:[%s5 + $0x70] sm:$0xff]
    %v874 = vld [vmem:[%s5 + $0x78] sm:$0xff]
    %v875 = vld [vmem:[%s5 + $0x80] sm:$0xff]
    %v876 = vld [vmem:[%s5 + $0x88] sm:$0xff]
    %v877 = vld [vmem:[%s5 + $0x90] sm:$0xff]
    %v878 = vld [vmem:[%s5 + $0x98] sm:$0xff]
    %v879 = vld [vmem:[%s5 + $0xa0] sm:$0xff]
    %v880 = vld [vmem:[%s5 + $0xa8] sm:$0xff]
    %v881 = vld [vmem:[%s5 + $0xb0] sm:$0xff]
    %v882 = vld [vmem:[%s5 + $0xb8] sm:$0xff]
    %v883 = vld [vmem:[%s5 + $0xc0] sm:$0xff]
    %v884 = vld [vmem:[%s5 + $0xc8] sm:$0xff]
    %v885 = vld [vmem:[%s5 + $0xd0] sm:$0xff]
    %v886 = vld [vmem:[%s5 + $0xd8] sm:$0xff]
    %v887 = vld [vmem:[%s5 + $0xe0] sm:$0xff]
    %v888 = vld [vmem:[%s5 + $0xe8] sm:$0xff]
    %v889 = vld [vmem:[%s5 + $0xf0] sm:$0xff]
    %v890 = vld [vmem:[%s5 + $0xf8] sm:$0xff]
    %v891 = vld [vmem:[%s6] sm:$0x1]
    %v893 = vlaneseq
    %v894 = vshrl.u32 %v893, 7
    %v895 = vsub.s32 0, %v894
    %v896 = vrot.slane %v891, %v895
    %898 = vmatprep.subr.mxu0 0.0
    %899 = vmatpush1.msra.mxu0 %v859
    %900 = vmatprep.subr.mxu0 0.0
    %901 = vmatpush1.msra.mxu0 %v860
    %902 = vmatprep.subr.mxu0 0.0
    %903 = vmatpush1.msra.mxu0 %v861
    %904 = vmatprep.subr.mxu0 0.0
    %905 = vmatpush1.msra.mxu0 %v862
    %906 = vmatprep.subr.mxu0 0.0
    %907 = vmatpush1.msra.mxu0 %v863
    %908 = vmatprep.subr.mxu0 0.0
    %909 = vmatpush1.msra.mxu0 %v864
    %910 = vmatprep.subr.mxu0 0.0
    %911 = vmatpush1.msra.mxu0 %v865
    %912 = vmatprep.subr.mxu0 0.0
    %913 = vmatpush1.msra.mxu0 %v866
    %914 = vmatprep.subr.mxu0 0.0
    %915 = vmatpush1.msra.mxu0 %v867
    %916 = vmatprep.subr.mxu0 0.0
    %917 = vmatpush1.msra.mxu0 %v868
    %918 = vmatprep.subr.mxu0 0.0
    %919 = vmatpush1.msra.mxu0 %v869
    %920 = vmatprep.subr.mxu0 0.0
    %921 = vmatpush1.msra.mxu0 %v870
    %922 = vmatprep.subr.mxu0 0.0
    %923 = vmatpush1.msra.mxu0 %v871
    %924 = vmatprep.subr.mxu0 0.0
    %925 = vmatpush1.msra.mxu0 %v872
    %926 = vmatprep.subr.mxu0 0.0
    %927 = vmatpush1.msra.mxu0 %v873
    %928 = vmatprep.subr.mxu0 0.0
    %929 = vmatpush1.msra.mxu0 %v874
    %930 = vmatprep.subr.mxu0 0.0
    %931 = vmatpush1.msra.mxu0 %v875
    %932 = vmatprep.subr.mxu0 0.0
    %933 = vmatpush1.msra.mxu0 %v876
    %934 = vmatprep.subr.mxu0 0.0
    %935 = vmatpush1.msra.mxu0 %v877
    %936 = vmatprep.subr.mxu0 0.0
    %937 = vmatpush1.msra.mxu0 %v878
    %938 = vmatprep.subr.mxu0 0.0
    %939 = vmatpush1.msra.mxu0 %v879
    %940 = vmatprep.subr.mxu0 0.0
    %941 = vmatpush1.msra.mxu0 %v880
    %942 = vmatprep.subr.mxu0 0.0
    %943 = vmatpush1.msra.mxu0 %v881
    %944 = vmatprep.subr.mxu0 0.0
    %945 = vmatpush1.msra.mxu0 %v882
    %946 = vmatprep.subr.mxu0 0.0
    %947 = vmatpush1.msra.mxu0 %v883
    %948 = vmatprep.subr.mxu0 0.0
    %949 = vmatpush1.msra.mxu0 %v884
    %950 = vmatprep.subr.mxu0 0.0
    %951 = vmatpush1.msra.mxu0 %v885
    %952 = vmatprep.subr.mxu0 0.0
    %953 = vmatpush1.msra.mxu0 %v886
    %954 = vmatprep.subr.mxu0 0.0
    %955 = vmatpush1.msra.mxu0 %v887
    %956 = vmatprep.subr.mxu0 0.0
    %957 = vmatpush1.msra.mxu0 %v888
    %958 = vmatprep.subr.mxu0 0.0
    %959 = vmatpush1.msra.mxu0 %v889
    %960 = vmatprep.subr.mxu0 0.0
    %961 = vmatpush1.msra.mxu0 %v890
    %962 = vmatprep.mubr.f32.mxu0 %v844
    %963 = vmatmul.mubr.f32.gmra.mrb[0].mxu0 %v843
    %v964 = vpop.f32.mrb[0].mxu0
    %v965 = vadd.f32 %v896, %v964
    %v966 = vpop.f32.mrb[0].mxu0
    %967 = vmatprep.mubr.f32.mxu0 %v846
    %968 = vmatmul.mubr.f32.gmra.mrb[0].mxu0 %v845
    %v969 = vpop.f32.mrb[0].mxu0
    %v970 = vadd.f32 %v896, %v969
    %v971 = vpop.f32.mrb[0].mxu0
    %972 = vmatprep.mubr.f32.mxu0 %v848
    %973 = vmatmul.mubr.f32.gmra.mrb[0].mxu0 %v847
    %v974 = vpop.f32.mrb[0].mxu0
    %v975 = vadd.f32 %v896, %v974
    %v976 = vpop.f32.mrb[0].mxu0
    %977 = vmatprep.mubr.f32.mxu0 %v850
    %978 = vmatmul.mubr.f32.gmra.mrb[0].mxu0 %v849
    %v979 = vpop.f32.mrb[0].mxu0
    %v980 = vadd.f32 %v896, %v979
    %v981 = vpop.f32.mrb[0].mxu0
    %982 = vmatprep.mubr.f32.mxu0 %v852
    %983 = vmatmul.mubr.f32.gmra.mrb[0].mxu0 %v851
    %v984 = vpop.f32.mrb[0].mxu0
    %v985 = vadd.f32 %v896, %v984
    %v986 = vpop.f32.mrb[0].mxu0
    %987 = vmatprep.mubr.f32.mxu0 %v854
    %988 = vmatmul.mubr.f32.gmra.mrb[0].mxu0 %v853
    %v989 = vpop.f32.mrb[0].mxu0
    %v990 = vadd.f32 %v896, %v989
    %v991 = vpop.f32.mrb[0].mxu0
    %992 = vmatprep.mubr.f32.mxu0 %v856
    %993 = vmatmul.mubr.f32.gmra.mrb[0].mxu0 %v855
    %v994 = vpop.f32.mrb[0].mxu0
    %v995 = vadd.f32 %v896, %v994
    %v996 = vpop.f32.mrb[0].mxu0
    %997 = vmatprep.mubr.f32.mxu0 %v858
    %998 = vmatmul.mubr.f32.gmra.mrb[0].mxu0 %v857
    %v999 = vpop.f32.mrb[0].mxu0
    %v1000 = vadd.f32 %v896, %v999
    %v1001 = vpop.f32.mrb[0].mxu0
    %1002 = vdwg.mxu0
    %1003 = vst.msk [vmem:[#allocation8] sm:$0xff] %vm123, %v965
    %1004 = vst.msk [vmem:[#allocation8 + $0x8] sm:$0xff] %vm123, %v970
    %1005 = vst.msk [vmem:[#allocation8 + $0x10] sm:$0xff] %vm123, %v975
    %1006 = vst.msk [vmem:[#allocation8 + $0x18] sm:$0xff] %vm123, %v980
    %1007 = vst.msk [vmem:[#allocation8 + $0x20] sm:$0xff] %vm123, %v985
    %1008 = vst.msk [vmem:[#allocation8 + $0x28] sm:$0xff] %vm123, %v990
    %1009 = vst.msk [vmem:[#allocation8 + $0x30] sm:$0xff] %vm123, %v995
    %1010 = vst.msk [vmem:[#allocation8 + $0x38] sm:$0xff] %vm123, %v1000
    // Predicated region
    $region38: #{tpu_custom_call.1} parent=1 // pred_check
      _
    $region39: #{tpu_custom_call.1} parent=1 // pred_check_branch
      %1012 = sbr.rel (0) target = $region41
    $region40: #{tpu_custom_call.1} parent=1 // pred_region
      %s1014 = ssub.s32 2048, 2048
      %1015 = vsyncadd [#allocation6], %s1014
      %s1016 = sshll.u32 [#allocation7], 4
      %s1017 = int_to_ptr.vmem [resolvable:$true] %s1016
      %1022 = dma.vmem_to_hbm [thread:$0]  %s1017, 2048, %s7, [#allocation6], 256, 256, 16
    $region41: #{tpu_custom_call.1} parent=1 // pred_fallthru
      _
    // Predicated region
    $region42: #{tpu_custom_call.1} parent=1 // pred_check
      _
    $region43: #{tpu_custom_call.1} parent=1 // pred_check_branch
      %1024 = sbr.rel (0) target = $region45
    $region44: #{tpu_custom_call.1} parent=1 // pred_region
      %s1026 = ssub.s32 1024, 1024
      %1027 = vsyncadd [#allocation9], %s1026
      %s1028 = sshll.u32 [#allocation8], 4
      %s1029 = int_to_ptr.vmem [resolvable:$true] %s1028
      %1034 = dma.vmem_to_hbm [thread:$0]  %s1029, 1024, %s8, [#allocation9], 128, 128, 8
    $region45: #{tpu_custom_call.1} parent=1 // pred_fallthru
      _
    // Predicated region
    $region46: #{tpu_custom_call.1} parent=1 // pred_check
      _
    $region47: #{tpu_custom_call.1} parent=1 // pred_check_branch
      %1036 = sbr.rel (0) target = $region49
    $region48: #{tpu_custom_call.1} parent=1 // pred_region
      %1037 = dma.done [#allocation6], 2048
    $region49: #{tpu_custom_call.1} parent=1 // pred_fallthru
      _
    // Predicated region
    $region50: #{tpu_custom_call.1} parent=1 // pred_check
      _
    $region51: #{tpu_custom_call.1} parent=1 // pred_check_branch
      %1039 = sbr.rel (0) target = $region53
    $region52: #{tpu_custom_call.1} parent=1 // pred_region
      %1040 = dma.done [#allocation9], 1024
    $region53: #{tpu_custom_call.1} parent=1 // pred_fallthru
      _
    %1041 = vsyncpa [#allocation5], 1
    %1042 = vsyncpa [#allocation6], 1
    %1043 = vsyncpa [#allocation9], 1

</llo_original>
